<compile_context>
chip_gen: v6e
topology: v6e:2x2x1
jax: 0.10.0
libtpu: 0.0.40
codegen_flags: <defaults>
</compile_context>

<pallas_src>
import jax
import jax.numpy as jnp
from jax.experimental import pallas as pl
from jax.experimental.pallas import tpu as pltpu

EPS = 1e-5
KT = 27  # 3*3*3 taps

VMEM_LIMIT_BYTES = 48 * 1024 * 1024   # explicit cap; safe on v5e/v6e/v7x
_TILE_BUDGET_BYTES = 36 * 1024 * 1024  # headroom under the limit for tiling


def _round_up(x, m):
    return ((x + m - 1) // m) * m


def _pick_tile_m(m, k, cout, out_itemsize):
    """Largest MXU-friendly spatial tile whose blocks fit the VMEM budget."""
    in_itemsize = 2  # bf16 GEMM operands
    # weights may be double-buffered + scale/bias (tiny)
    fixed = 2 * k * cout * in_itemsize + 4 * cout * 4
    # double-buffered input rows + double-buffered output rows
    per_row = 2 * (k * in_itemsize + cout * out_itemsize)
    tm = (_TILE_BUDGET_BYTES - fixed) // max(per_row, 1)
    tm = max(16, min(tm, 2048))
    if m <= tm:
        return _round_up(m, 16)          # single tile covers all of M
    if tm >= 128:
        tm = (tm // 128) * 128           # MXU-friendly M granularity
    else:
        tm = (tm // 16) * 16             # bf16 sublane granularity
    return tm


def _gemm_bn_relu_kernel(xs_ref, w_ref, scale_ref, bias_ref, o_ref):
    """out = relu(scale * (xs @ w) + bias) for one (tm, K) x (K, Cout) tile.

    xs_ref:    (tm, 27*Cin)   bf16 im2col tile
    w_ref:     (27*Cin, Cout) bf16 flattened conv taps
    scale_ref: (1, Cout)      f32 folded BN scale  (gamma / sqrt(var + eps))
    bias_ref:  (1, Cout)      f32 folded BN bias   (beta - mean * scale)
    o_ref:     (tm, Cout)
    """
    acc = jnp.dot(xs_ref[...], w_ref[...], preferred_element_type=jnp.float32)
    y = acc * scale_ref[...] + bias_ref[...]
    o_ref[...] = jnp.maximum(y, 0.0).astype(o_ref.dtype)


def _im2col_3x3x3(x_ndhwc):
    """(N, D, H, W, Cin) -> (N, D*H*W, 27*Cin) bf16, K ordered (kd, kh, kw, ci)."""
    n, d, h, w, cin = x_ndhwc.shape
    xp = jnp.pad(x_ndhwc.astype(jnp.bfloat16),
                 ((0, 0), (1, 1), (1, 1), (1, 1), (0, 0)))
    slabs = []
    for kd in range(3):
        for kh in range(3):
            for kw in range(3):
                slabs.append(xp[:, kd:kd + d, kh:kh + h, kw:kw + w, :])
    xs = jnp.concatenate(slabs, axis=-1)           # (N, D, H, W, 27*Cin)
    return xs.reshape(n, d * h * w, KT * cin)


def conv3x3x3_bn_relu(x_ndhwc, w_dhwio, scale, bias, *, out_dtype=jnp.float32):
    """x_ndhwc: (N, D, H, W, Cin); w_dhwio: (3,3,3,Cin,Cout). Returns NDHWC."""
    n, d, h, w, cin = x_ndhwc.shape
    cout = w_dhwio.shape[-1]
    k = KT * cin
    m = d * h * w

    xs = _im2col_3x3x3(x_ndhwc)                          # (N, M, K) bf16
    wk = w_dhwio.reshape(k, cout).astype(jnp.bfloat16)   # (K, Cout)  bf16
    scale2 = scale.astype(jnp.float32)[None, :]
    bias2 = bias.astype(jnp.float32)[None, :]

    tm = _pick_tile_m(m, k, cout, jnp.dtype(out_dtype).itemsize)
    mp = _round_up(m, tm)
    if mp != m:
        xs = jnp.pad(xs, ((0, 0), (0, mp - m), (0, 0)))

    out = pl.pallas_call(
        _gemm_bn_relu_kernel,
        out_shape=jax.ShapeDtypeStruct((n, mp, cout), out_dtype),
        grid_spec=pltpu.PrefetchScalarGridSpec(
            num_scalar_prefetch=0,
            grid=(n, mp // tm),
            in_specs=[
                pl.BlockSpec((None, tm, k), lambda b, i: (b, i, 0)),
                pl.BlockSpec((k, cout), lambda b, i: (0, 0)),
                pl.BlockSpec((1, cout), lambda b, i: (0, 0)),
                pl.BlockSpec((1, cout), lambda b, i: (0, 0)),
            ],
            out_specs=pl.BlockSpec((None, tm, cout), lambda b, i: (b, i, 0)),
        ),
        compiler_params=pltpu.CompilerParams(
            dimension_semantics=("parallel", "parallel"),
            vmem_limit_bytes=VMEM_LIMIT_BYTES,
        ),
    )(xs, wk, scale2, bias2)

    return out[:, :m, :].reshape(n, d, h, w, cout)


def fold_bn(gamma, beta, running_mean, running_var, eps=EPS):
    scale = gamma / jnp.sqrt(running_var + eps)
    bias = beta - running_mean * scale
    return scale, bias


def double_conv(x_ncdhw, params):
    """Forward pass of DoubleConv. Input/output in PyTorch NCDHW layout."""
    x = jnp.transpose(x_ncdhw, (0, 2, 3, 4, 1))  # -> NDHWC (stays NDHWC inside)
    s1, b1 = fold_bn(params["gamma1"], params["beta1"],
                     params["mean1"], params["var1"])
    s2, b2 = fold_bn(params["gamma2"], params["beta2"],
                     params["mean2"], params["var2"])
    # First conv emits a compact bf16 intermediate (feeds the bf16 GEMM anyway).
    y = conv3x3x3_bn_relu(x, params["w1"], s1, b1, out_dtype=jnp.bfloat16)
    y = conv3x3x3_bn_relu(y, params["w2"], s2, b2, out_dtype=jnp.float32)
    return jnp.transpose(y, (0, 4, 1, 2, 3))  # -> NCDHW


# ---------------------------------------------------------------------------
# Pure-JAX reference (for correctness checking only; f32 HIGHEST).
# ---------------------------------------------------------------------------
def _ref_block(x_ndhwc, w_dhwio, gamma, beta, mean, var):
    y = jax.lax.conv_general_dilated(
        x_ndhwc, w_dhwio, window_strides=(1, 1, 1),
        padding=((1, 1), (1, 1), (1, 1)),
        dimension_numbers=("NDHWC", "DHWIO", "NDHWC"),
        precision=jax.lax.Precision.HIGHEST,
    )
    y = (y - mean) / jnp.sqrt(var + EPS) * gamma + beta
    return jnp.maximum(y, 0.0)


def ref_double_conv(x_ncdhw, p):
    x = jnp.transpose(x_ncdhw, (0, 2, 3, 4, 1))
    y = _ref_block(x, p["w1"], p["gamma1"], p["beta1"], p["mean1"], p["var1"])
    y = _ref_block(y, p["w2"], p["gamma2"], p["beta2"], p["mean2"], p["var2"])
    return jnp.transpose(y, (0, 4, 1, 2, 3))


def make_params(key, in_channels, out_channels, mid_channels=None):
    if not mid_channels:
        mid_channels = out_channels
    ks = jax.random.split(key, 10)
    f32 = jnp.float32
    return {
        # conv weights, DHWIO layout
        "w1": 0.1 * jax.random.normal(ks[0], (3, 3, 3, in_channels, mid_channels), f32),
        "w2": 0.1 * jax.random.normal(ks[1], (3, 3, 3, mid_channels, out_channels), f32),
        # BN1 params + running stats
        "gamma1": 1.0 + 0.1 * jax.random.normal(ks[2], (mid_channels,), f32),
        "beta1": 0.1 * jax.random.normal(ks[3], (mid_channels,), f32),
        "mean1": 0.05 * jax.random.normal(ks[4], (mid_channels,), f32),
        "var1": 1.0 + 0.1 * jnp.abs(jax.random.normal(ks[5], (mid_channels,), f32)),
        # BN2 params + running stats
        "gamma2": 1.0 + 0.1 * jax.random.normal(ks[6], (out_channels,), f32),
        "beta2": 0.1 * jax.random.normal(ks[7], (out_channels,), f32),
        "mean2": 0.05 * jax.random.normal(ks[8], (out_channels,), f32),
        "var2": 1.0 + 0.1 * jnp.abs(jax.random.normal(ks[9], (out_channels,), f32)),
    }


if __name__ == "__main__":
    key = jax.random.PRNGKey(0)
    k_x, k_p = jax.random.split(key)

    N, C_IN, C_OUT = 2, 4, 8
    D = H = W = 8

    params = make_params(k_p, C_IN, C_OUT)
    x = jax.random.normal(k_x, (N, C_IN, D, H, W), jnp.float32)  # NCDHW

    out = jax.jit(double_conv)(x, params)
    out = jax.block_until_ready(out)

    ref = jax.block_until_ready(ref_double_conv(x, params))

    assert out.shape == (N, C_OUT, D, H, W), out.shape
    # Kernel runs bf16 GEMMs with f32 accumulation (and a bf16 intermediate),
    # so compare against the f32 HIGHEST reference with a loosened tolerance.
    assert jnp.allclose(out, ref, rtol=5e-2, atol=5e-2), (
        float(jnp.max(jnp.abs(out - ref)))
    )
    print("KERNEL_OK")
</pallas_src>

<mosaic_0001>
module attributes {stable_mosaic.version = 11 : i64} {
  func.func @_gemm_bn_relu_kernel(%arg0: i32, %arg1: i32, %arg2: memref<1x512x108xbf16, #tpu.memory_space<vmem>>, %arg3: memref<108x8xbf16, #tpu.memory_space<vmem>>, %arg4: memref<1x8xf32, #tpu.memory_space<vmem>>, %arg5: memref<1x8xf32, #tpu.memory_space<vmem>>, %arg6: memref<1x512x8xbf16, #tpu.memory_space<vmem>>) attributes {dimension_semantics = [#tpu.dimension_semantics<parallel>, #tpu.dimension_semantics<parallel>], iteration_bounds = array<i64: 2, 1>, scalar_prefetch = 0 : i64, scratch_operands = 0 : i64, tpu.core_type = #tpu.core_type<tc>, window_params = [{transform_indices = @transform_0, window_bounds = array<i64: 1, 512, 108>}, {pipeline_mode = #tpu.pipeline_mode<synchronous>, transform_indices = @transform_1, window_bounds = array<i64: 108, 8>}, {pipeline_mode = #tpu.pipeline_mode<synchronous>, transform_indices = @transform_2, window_bounds = array<i64: 1, 8>}, {pipeline_mode = #tpu.pipeline_mode<synchronous>, transform_indices = @transform_3, window_bounds = array<i64: 1, 8>}, {transform_indices = @transform_4, window_bounds = array<i64: 1, 512, 8>}]} {
    %c0 = arith.constant 0 : index
    %c0_0 = arith.constant 0 : index
    %c0_1 = arith.constant 0 : index
    %0 = vector.load %arg2[%c0, %c0_0, %c0_1] : memref<1x512x108xbf16, #tpu.memory_space<vmem>>, vector<1x512x108xbf16>
    %1 = vector.shape_cast %0 : vector<1x512x108xbf16> to vector<512x108xbf16>
    %c0_2 = arith.constant 0 : index
    %c0_3 = arith.constant 0 : index
    %2 = vector.load %arg3[%c0_2, %c0_3] : memref<108x8xbf16, #tpu.memory_space<vmem>>, vector<108x8xbf16>
    %cst = arith.constant dense<0.000000e+00> : vector<512x8xf32>
    %3 = tpu.matmul %1, %2, %cst {dimension_numbers = #tpu.dot_dimension_numbers<[1], [0], [0], [1], [0, 0, 1, 1], [], []>} : vector<512x108xbf16>, vector<108x8xbf16>, vector<512x8xf32> -> vector<512x8xf32>
    %c0_4 = arith.constant 0 : index
    %c0_5 = arith.constant 0 : index
    %4 = vector.load %arg4[%c0_4, %c0_5] : memref<1x8xf32, #tpu.memory_space<vmem>>, vector<1x8xf32>
    %5 = vector.broadcast %4 : vector<1x8xf32> to vector<512x8xf32>
    %6 = arith.mulf %3, %5 : vector<512x8xf32>
    %c0_6 = arith.constant 0 : index
    %c0_7 = arith.constant 0 : index
    %7 = vector.load %arg5[%c0_6, %c0_7] : memref<1x8xf32, #tpu.memory_space<vmem>>, vector<1x8xf32>
    %8 = vector.broadcast %7 : vector<1x8xf32> to vector<512x8xf32>
    %9 = arith.addf %6, %8 : vector<512x8xf32>
    %cst_8 = arith.constant 0.000000e+00 : f32
    %10 = vector.broadcast %cst_8 : f32 to vector<512x8xf32>
    %11 = arith.maximumf %9, %10 : vector<512x8xf32>
    %12 = arith.truncf %11 : vector<512x8xf32> to vector<512x8xbf16>
    %c0_9 = arith.constant 0 : index
    %c0_10 = arith.constant 0 : index
    %c0_11 = arith.constant 0 : index
    %13 = vector.load %arg6[%c0_9, %c0_10, %c0_11] : memref<1x512x8xbf16, #tpu.memory_space<vmem>>, vector<1x512x8xbf16>
    %14 = vector.shape_cast %13 : vector<1x512x8xbf16> to vector<512x8xbf16>
    %15 = vector.shape_cast %12 : vector<512x8xbf16> to vector<1x512x8xbf16>
    tpu.vector_store %arg6[%c0_9, %c0_10, %c0_11], %15 {strides = array<i32>} : memref<1x512x8xbf16, #tpu.memory_space<vmem>>, vector<1x512x8xbf16>,
    return
  }
  func.func @transform_0(%arg0: i32, %arg1: i32) -> (i32, i32, i32) {
    %c0_i32 = arith.constant 0 : i32
    %c0_i32_0 = arith.constant 0 : i32
    return %arg0, %arg1, %c0_i32 : i32, i32, i32
  }
  func.func @transform_1(%arg0: i32, %arg1: i32) -> (i32, i32) {
    %c0_i32 = arith.constant 0 : i32
    %c0_i32_0 = arith.constant 0 : i32
    %c0_i32_1 = arith.constant 0 : i32
    return %c0_i32, %c0_i32_0 : i32, i32
  }
  func.func @transform_2(%arg0: i32, %arg1: i32) -> (i32, i32) {
    %c0_i32 = arith.constant 0 : i32
    %c0_i32_0 = arith.constant 0 : i32
    %c0_i32_1 = arith.constant 0 : i32
    return %c0_i32, %c0_i32_0 : i32, i32
  }
  func.func @transform_3(%arg0: i32, %arg1: i32) -> (i32, i32) {
    %c0_i32 = arith.constant 0 : i32
    %c0_i32_0 = arith.constant 0 : i32
    %c0_i32_1 = arith.constant 0 : i32
    return %c0_i32, %c0_i32_0 : i32, i32
  }
  func.func @transform_4(%arg0: i32, %arg1: i32) -> (i32, i32, i32) {
    %c0_i32 = arith.constant 0 : i32
    %c0_i32_0 = arith.constant 0 : i32
    return %arg0, %arg1, %c0_i32 : i32, i32, i32
  }
}

module attributes {stable_mosaic.version = 11 : i64} {
  func.func @_gemm_bn_relu_kernel(%arg0: i32, %arg1: i32, %arg2: memref<1x512x216xbf16, #tpu.memory_space<vmem>>, %arg3: memref<216x8xbf16, #tpu.memory_space<vmem>>, %arg4: memref<1x8xf32, #tpu.memory_space<vmem>>, %arg5: memref<1x8xf32, #tpu.memory_space<vmem>>, %arg6: memref<1x512x8xf32, #tpu.memory_space<vmem>>) attributes {dimension_semantics = [#tpu.dimension_semantics<parallel>, #tpu.dimension_semantics<parallel>], iteration_bounds = array<i64: 2, 1>, scalar_prefetch = 0 : i64, scratch_operands = 0 : i64, tpu.core_type = #tpu.core_type<tc>, window_params = [{transform_indices = @transform_0, window_bounds = array<i64: 1, 512, 216>}, {pipeline_mode = #tpu.pipeline_mode<synchronous>, transform_indices = @transform_1, window_bounds = array<i64: 216, 8>}, {pipeline_mode = #tpu.pipeline_mode<synchronous>, transform_indices = @transform_2, window_bounds = array<i64: 1, 8>}, {pipeline_mode = #tpu.pipeline_mode<synchronous>, transform_indices = @transform_3, window_bounds = array<i64: 1, 8>}, {transform_indices = @transform_4, window_bounds = array<i64: 1, 512, 8>}]} {
    %c0 = arith.constant 0 : index
    %c0_0 = arith.constant 0 : index
    %c0_1 = arith.constant 0 : index
    %0 = vector.load %arg2[%c0, %c0_0, %c0_1] : memref<1x512x216xbf16, #tpu.memory_space<vmem>>, vector<1x512x216xbf16>
    %1 = vector.shape_cast %0 : vector<1x512x216xbf16> to vector<512x216xbf16>
    %c0_2 = arith.constant 0 : index
    %c0_3 = arith.constant 0 : index
    %2 = vector.load %arg3[%c0_2, %c0_3] : memref<216x8xbf16, #tpu.memory_space<vmem>>, vector<216x8xbf16>
    %cst = arith.constant dense<0.000000e+00> : vector<512x8xf32>
    %3 = tpu.matmul %1, %2, %cst {dimension_numbers = #tpu.dot_dimension_numbers<[1], [0], [0], [1], [0, 0, 1, 1], [], []>} : vector<512x216xbf16>, vector<216x8xbf16>, vector<512x8xf32> -> vector<512x8xf32>
    %c0_4 = arith.constant 0 : index
    %c0_5 = arith.constant 0 : index
    %4 = vector.load %arg4[%c0_4, %c0_5] : memref<1x8xf32, #tpu.memory_space<vmem>>, vector<1x8xf32>
    %5 = vector.broadcast %4 : vector<1x8xf32> to vector<512x8xf32>
    %6 = arith.mulf %3, %5 : vector<512x8xf32>
    %c0_6 = arith.constant 0 : index
    %c0_7 = arith.constant 0 : index
    %7 = vector.load %arg5[%c0_6, %c0_7] : memref<1x8xf32, #tpu.memory_space<vmem>>, vector<1x8xf32>
    %8 = vector.broadcast %7 : vector<1x8xf32> to vector<512x8xf32>
    %9 = arith.addf %6, %8 : vector<512x8xf32>
    %cst_8 = arith.constant 0.000000e+00 : f32
    %10 = vector.broadcast %cst_8 : f32 to vector<512x8xf32>
    %11 = arith.maximumf %9, %10 : vector<512x8xf32>
    %c0_9 = arith.constant 0 : index
    %c0_10 = arith.constant 0 : index
    %c0_11 = arith.constant 0 : index
    %12 = vector.load %arg6[%c0_9, %c0_10, %c0_11] : memref<1x512x8xf32, #tpu.memory_space<vmem>>, vector<1x512x8xf32>
    %13 = vector.shape_cast %12 : vector<1x512x8xf32> to vector<512x8xf32>
    %14 = vector.shape_cast %11 : vector<512x8xf32> to vector<1x512x8xf32>
    tpu.vector_store %arg6[%c0_9, %c0_10, %c0_11], %14 {strides = array<i32>} : memref<1x512x8xf32, #tpu.memory_space<vmem>>, vector<1x512x8xf32>,
    return
  }
  func.func @transform_0(%arg0: i32, %arg1: i32) -> (i32, i32, i32) {
    %c0_i32 = arith.constant 0 : i32
    %c0_i32_0 = arith.constant 0 : i32
    return %arg0, %arg1, %c0_i32 : i32, i32, i32
  }
  func.func @transform_1(%arg0: i32, %arg1: i32) -> (i32, i32) {
    %c0_i32 = arith.constant 0 : i32
    %c0_i32_0 = arith.constant 0 : i32
    %c0_i32_1 = arith.constant 0 : i32
    return %c0_i32, %c0_i32_0 : i32, i32
  }
  func.func @transform_2(%arg0: i32, %arg1: i32) -> (i32, i32) {
    %c0_i32 = arith.constant 0 : i32
    %c0_i32_0 = arith.constant 0 : i32
    %c0_i32_1 = arith.constant 0 : i32
    return %c0_i32, %c0_i32_0 : i32, i32
  }
  func.func @transform_3(%arg0: i32, %arg1: i32) -> (i32, i32) {
    %c0_i32 = arith.constant 0 : i32
    %c0_i32_0 = arith.constant 0 : i32
    %c0_i32_1 = arith.constant 0 : i32
    return %c0_i32, %c0_i32_0 : i32, i32
  }
  func.func @transform_4(%arg0: i32, %arg1: i32) -> (i32, i32, i32) {
    %c0_i32 = arith.constant 0 : i32
    %c0_i32_0 = arith.constant 0 : i32
    return %arg0, %arg1, %c0_i32 : i32, i32, i32
  }
}

</mosaic_0001>

<llo_original>
// kernel: double_conv.2
$region0: #{double_conv.2}
  #allocation0 [shape = 'u32[]', space=smem, size = 0x4, offset = 0x4, fixed_abs, tag = 'smem constant byte address 0x4 - core index']
  #allocation1 [shape = 'u32[144,128]{1,0:T(1,128)}', space=vmem, size = 0x12000, scoped, tag = 'internal scratch']
  %s0 = inlined_call_operand.vmem [shape: bf16[2,512,108], index: 0, kind: input, shape index: {}]
  %s1 = inlined_call_operand.vmem [shape: bf16[108,8], index: 1, kind: input, shape index: {}]
  %s2 = inlined_call_operand.vmem [shape: f32[1,8], index: 2, kind: input, shape index: {}]
  %s3 = inlined_call_operand.vmem [shape: f32[1,8], index: 3, kind: input, shape index: {}]
  %s4 = inlined_call_operand.vmem [shape: bf16[2,512,8], index: 4, kind: output, shape index: {}]
  %s5 = sld [smem:[#allocation0]]
  $region49: #{double_conv.2} parent=0
    _
  %s7 = ssub.s32 1, %s5
  %s8 = scalar_select 0, %s7, %s5
  loop: start=0, step=1, limit=4
  $region2: #{double_conv.2} parent=0 // loop_pre_header
    _
  $region3: #{double_conv.2} parent=0 // loop_header
    %s10 = sphi 0, %s14
    %p11 = scmp.ge.s32.totalorder %s10, 4
    %s17 = sphi 0, %s29
    %s18 = sphi 0, %s25
    %s19 = sphi 0, %s17
    %s20 = sphi 0, %s18
    %s21 = sphi 0, %s19
    %s22 = sphi 0, %s20
    %s34 = sphi 0, %s36
    %s37 = sphi 0, %s34
    %s38 = sphi 0, %s37
    %s54 = sphi 0, %s38
    %s58 = sphi 0, %s58
    %s60 = sphi 0, %s58
    %s61 = sphi 0, %s60
    %s75 = sphi 0, %s61
    %s79 = sphi 0, %s79
    %s81 = sphi 0, %s79
    %s82 = sphi 0, %s81
    %s96 = sphi 0, %s82
    %s100 = sphi 0, %s100
    %s102 = sphi 0, %s100
    %s103 = sphi 0, %s102
    %s117 = sphi 0, %s103
    %s125 = sphi 0, %s127
    %s128 = sphi 0, %s125
    %s129 = sphi 0, %s128
    %s145 = sphi 0, %s129
  $region4: #{double_conv.2} parent=0 // loop_header_branch
    %13 = sbr.rel (%p11) target = $region8
  $region5: #{double_conv.2} parent=0 // loop_body
    %s15 = ssub.s32 %s10, 1
    %s16 = ssub.s32 %s10, 2
    %s23 = sadd.s32 1, %s18
    %p24 = scmp.ge.s32.totalorder %s23, 1
    %s25 = scalar_select %p24, 0, %s23
    %s26 = sadd.s32 1, %s17
    %s27 = scalar_select %p24, %s26, %s17
    %p28 = scmp.ge.s32.totalorder %s27, 2
    %s29 = scalar_select %p28, 0, %s27
    %s30 = ssub.s32 %s17, %s29
    %s31 = ssub.s32 %s18, %s25
    %s32 = sor.u32 %s30, %s31
    %p33 = scmp.eq.s32.totalorder %s32, 0
    %s35 = sadd.s32 %s34, 1
    %s36 = scalar_select %p33, %s34, %s35
    %p39 = pneg %p33
    %p40 = scmp.eq.s32.totalorder %s10, 1
    %p41 = por %p39, %p40
    %p42 = scmp.ne.s32.totalorder %s34, %s37
    %p43 = scmp.eq.s32.totalorder %s10, 0
    %p44 = por %p42, %p43
    %p45 = scmp.ne.s32.totalorder %s34, %s37
    %p46 = scmp.eq.s32.totalorder %s15, 1
    %p47 = por %p45, %p46
    %p48 = scmp.ne.s32.totalorder %s37, %s38
    %p49 = scmp.eq.s32.totalorder %s15, 0
    %p50 = por %p48, %p49
    %p51 = scmp.ne.s32.totalorder %s37, %s38
    %p52 = scmp.eq.s32.totalorder %s16, 1
    %p53 = por %p51, %p52
    %p55 = scmp.ne.s32.totalorder %s38, %s54
    %p56 = scmp.eq.s32.totalorder %s16, 0
    %p57 = por %p55, %p56
    %s59 = sadd.s32 %s58, 1
    %p62 = scmp.eq.s32.totalorder %s10, 1
    %p63 = scmp.ne.s32.totalorder %s58, %s60
    %p64 = scmp.eq.s32.totalorder %s10, 0
    %p65 = por %p63, %p64
    %p66 = scmp.ne.s32.totalorder %s58, %s60
    %p67 = scmp.eq.s32.totalorder %s15, 1
    %p68 = por %p66, %p67
    %p69 = scmp.ne.s32.totalorder %s60, %s61
    %p70 = scmp.eq.s32.totalorder %s15, 0
    %p71 = por %p69, %p70
    %p72 = scmp.ne.s32.totalorder %s60, %s61
    %p73 = scmp.eq.s32.totalorder %s16, 1
    %p74 = por %p72, %p73
    %p76 = scmp.ne.s32.totalorder %s61, %s75
    %p77 = scmp.eq.s32.totalorder %s16, 0
    %p78 = por %p76, %p77
    %s80 = sadd.s32 %s79, 1
    %p83 = scmp.eq.s32.totalorder %s10, 1
    %p84 = scmp.ne.s32.totalorder %s79, %s81
    %p85 = scmp.eq.s32.totalorder %s10, 0
    %p86 = por %p84, %p85
    %p87 = scmp.ne.s32.totalorder %s79, %s81
    %p88 = scmp.eq.s32.totalorder %s15, 1
    %p89 = por %p87, %p88
    %p90 = scmp.ne.s32.totalorder %s81, %s82
    %p91 = scmp.eq.s32.totalorder %s15, 0
    %p92 = por %p90, %p91
    %p93 = scmp.ne.s32.totalorder %s81, %s82
    %p94 = scmp.eq.s32.totalorder %s16, 1
    %p95 = por %p93, %p94
    %p97 = scmp.ne.s32.totalorder %s82, %s96
    %p98 = scmp.eq.s32.totalorder %s16, 0
    %p99 = por %p97, %p98
    %s101 = sadd.s32 %s100, 1
    %p104 = scmp.eq.s32.totalorder %s10, 1
    %p105 = scmp.ne.s32.totalorder %s100, %s102
    %p106 = scmp.eq.s32.totalorder %s10, 0
    %p107 = por %p105, %p106
    %p108 = scmp.ne.s32.totalorder %s100, %s102
    %p109 = scmp.eq.s32.totalorder %s15, 1
    %p110 = por %p108, %p109
    %p111 = scmp.ne.s32.totalorder %s102, %s103
    %p112 = scmp.eq.s32.totalorder %s15, 0
    %p113 = por %p111, %p112
    %p114 = scmp.ne.s32.totalorder %s102, %s103
    %p115 = scmp.eq.s32.totalorder %s16, 1
    %p116 = por %p114, %p115
    %p118 = scmp.ne.s32.totalorder %s103, %s117
    %p119 = scmp.eq.s32.totalorder %s16, 0
    %p120 = por %p118, %p119
    %s121 = ssub.s32 %s17, %s29
    %s122 = ssub.s32 %s18, %s25
    %s123 = sor.u32 %s121, %s122
    %p124 = scmp.eq.s32.totalorder %s123, 0
    %s126 = sadd.s32 %s125, 1
    %s127 = scalar_select %p124, %s125, %s126
    %p130 = pneg %p124
    %p131 = scmp.eq.s32.totalorder %s10, 1
    %p132 = por %p130, %p131
    %p133 = scmp.ne.s32.totalorder %s125, %s128
    %p134 = scmp.eq.s32.totalorder %s10, 0
    %p135 = por %p133, %p134
    %p136 = scmp.ne.s32.totalorder %s125, %s128
    %p137 = scmp.eq.s32.totalorder %s15, 1
    %p138 = por %p136, %p137
    %p139 = scmp.ne.s32.totalorder %s128, %s129
    %p140 = scmp.eq.s32.totalorder %s15, 0
    %p141 = por %p139, %p140
    %p142 = scmp.ne.s32.totalorder %s128, %s129
    %p143 = scmp.eq.s32.totalorder %s16, 1
    %p144 = por %p142, %p143
    %p146 = scmp.ne.s32.totalorder %s129, %s145
    %p147 = scmp.eq.s32.totalorder %s16, 0
    %p148 = por %p146, %p147
    %p149 = scmp.le.s32.totalorder 1, %s10
    %p150 = scmp.lt.s32.totalorder %s10, 3
    %p151 = pnand %p149, %p150
    %p152 = pneg %p151
    // Predicated region
    $region9: #{double_conv.2} parent=5 // pred_check
      _
    $region10: #{double_conv.2} parent=5 // pred_check_branch
      %154 = sbr.rel (%p151) target = $region12
    $region11: #{double_conv.2} parent=5 // pred_region
      %s155 = ssub.s32 %s10, 1
      // Predicated region
      $region13: #{double_conv.2} parent=11 // pred_check
        %p156 = pneg %p71
      $region14: #{double_conv.2} parent=11 // pred_check_branch
        %158 = sbr.rel (%p156) target = $region16
      $region15: #{double_conv.2} parent=11 // pred_region
        _
      $region16: #{double_conv.2} parent=11 // pred_fallthru
        _
      // Predicated region
      $region17: #{double_conv.2} parent=11 // pred_check
        %p159 = pneg %p92
      $region18: #{double_conv.2} parent=11 // pred_check_branch
        %161 = sbr.rel (%p159) target = $region20
      $region19: #{double_conv.2} parent=11 // pred_region
        _
      $region20: #{double_conv.2} parent=11 // pred_fallthru
        _
      // Predicated region
      $region21: #{double_conv.2} parent=11 // pred_check
        %p162 = pneg %p113
      $region22: #{double_conv.2} parent=11 // pred_check_branch
        %164 = sbr.rel (%p162) target = $region24
      $region23: #{double_conv.2} parent=11 // pred_region
        _
      $region24: #{double_conv.2} parent=11 // pred_fallthru
        _
    $region12: #{double_conv.2} parent=5 // pred_fallthru
      _
    %p165 = scmp.lt.s32.totalorder %s10, 2
    // Predicated region
    $region25: #{double_conv.2} parent=5 // pred_check
      %p166 = pneg %p165
    $region26: #{double_conv.2} parent=5 // pred_check_branch
      %168 = sbr.rel (%p166) target = $region28
    $region27: #{double_conv.2} parent=5 // pred_region
      // Predicated region
      $region29: #{double_conv.2} parent=27 // pred_check
        %p169 = pneg %p44
      $region30: #{double_conv.2} parent=27 // pred_check_branch
        %171 = sbr.rel (%p169) target = $region32
      $region31: #{double_conv.2} parent=27 // pred_region
        %s172 = smul.u32 64, %s18
        %p173 = scmp.lt.s32.totalorder %s17, 1
        %s174 = scalar_select %p173, %s17, 1
        %p175 = scmp.lt.s32.totalorder %s172, 63
        %s176 = scalar_select %p175, %s172, 63
        %s177 = smul.addr %s174, 64
        %s178 = sadd.s32 %s176, %s177
        %s179 = smul.addr %s178, 4
        %s180 = scalar_lea.vmem %s0, %s179
        %s181 = smul.u32 64, %s18
      $region32: #{double_conv.2} parent=27 // pred_fallthru
        _
    $region28: #{double_conv.2} parent=5 // pred_fallthru
      _
    %p182 = scmp.le.s32.totalorder 1, %s10
    %p183 = scmp.lt.s32.totalorder %s10, 3
    %p184 = pnand %p182, %p183
    %p185 = pneg %p184
    // Predicated region
    $region33: #{double_conv.2} parent=5 // pred_check
      _
    $region34: #{double_conv.2} parent=5 // pred_check_branch
      %187 = sbr.rel (%p184) target = $region36
    $region35: #{double_conv.2} parent=5 // pred_region
      %s188 = ssub.s32 %s10, 1
      %s189 = smul.u32 64, %s20
      %p190 = scmp.lt.s32.totalorder %s19, 1
      %s191 = scalar_select %p190, %s19, 1
      %p192 = scmp.lt.s32.totalorder %s189, 63
      %s193 = scalar_select %p192, %s189, 63
      %s194 = smul.addr %s191, 64
      %s195 = sadd.s32 %s193, %s194
      %s196 = smul.addr %s195, 4
      %s197 = scalar_lea.vmem %s0, %s196
      %p198 = pneg %p50
      %p199 = pneg %p47
      %p200 = pneg %p71
      %p201 = pneg %p68
      %p202 = pneg %p92
      %p203 = pneg %p89
      %p204 = pneg %p113
      %p205 = pneg %p110
      %p206 = pneg %p141
      %p207 = pneg %p138
      %s208 = smul.u32 64, %s20
      %p209 = scmp.lt.s32.totalorder %s19, 1
      %s210 = scalar_select %p209, %s19, 1
      %p211 = scmp.lt.s32.totalorder %s208, 63
      %s212 = scalar_select %p211, %s208, 63
      %s213 = smul.addr %s210, 64
      %s214 = sadd.s32 %s212, %s213
      %s215 = smul.addr %s214, 4
      %s216 = scalar_lea.vmem %s4, %s215
      %s217 = smul.u32 64, %s20
      %p218 = scmp.lt.s32.totalorder %s19, 1
      %s219 = scalar_select %p218, %s19, 1
      %p220 = scmp.lt.s32.totalorder %s217, 63
      %s221 = scalar_select %p220, %s217, 63
      %s222 = smul.addr %s219, 64
      %s223 = sadd.s32 %s221, %s222
      %s224 = smul.addr %s223, 4
      %s225 = scalar_lea.vmem %s0, %s224
      %s226 = smul.u32 64, %s20
      %s227 = smul.u32 64, %s20
      %p228 = scmp.lt.s32.totalorder %s19, 1
      %s229 = scalar_select %p228, %s19, 1
      %p230 = scmp.lt.s32.totalorder %s227, 63
      %s231 = scalar_select %p230, %s227, 63
      %s232 = smul.addr %s229, 64
      %s233 = sadd.s32 %s231, %s232
      %s234 = smul.addr %s233, 4
      %s235 = scalar_lea.vmem %s4, %s234
      %s236 = smul.u32 64, %s20
      %v238 = vld [vmem:[%s225] sm:$0xf]
      %v239 = vld [vmem:[%s225 + $0x4] sm:$0xf]
      %v240 = vld [vmem:[%s225 + $0x8] sm:$0xf]
      %v241 = vld [vmem:[%s225 + $0xc] sm:$0xf]
      %v242 = vld [vmem:[%s225 + $0x10] sm:$0xf]
      %v243 = vld [vmem:[%s225 + $0x14] sm:$0xf]
      %v244 = vld [vmem:[%s225 + $0x18] sm:$0xf]
      %v245 = vld [vmem:[%s225 + $0x1c] sm:$0xf]
      %v246 = vld [vmem:[%s225 + $0x20] sm:$0xf]
      %v247 = vld [vmem:[%s225 + $0x24] sm:$0xf]
      %v248 = vld [vmem:[%s225 + $0x28] sm:$0xf]
      %v249 = vld [vmem:[%s225 + $0x2c] sm:$0xf]
      %v250 = vld [vmem:[%s225 + $0x30] sm:$0xf]
      %v251 = vld [vmem:[%s225 + $0x34] sm:$0xf]
      %v252 = vld [vmem:[%s225 + $0x38] sm:$0xf]
      %v253 = vld [vmem:[%s225 + $0x3c] sm:$0xf]
      %v254 = vld [vmem:[%s225 + $0x40] sm:$0xf]
      %v255 = vld [vmem:[%s225 + $0x44] sm:$0xf]
      %v256 = vld [vmem:[%s225 + $0x48] sm:$0xf]
      %v257 = vld [vmem:[%s225 + $0x4c] sm:$0xf]
      %v258 = vld [vmem:[%s225 + $0x50] sm:$0xf]
      %v259 = vld [vmem:[%s225 + $0x54] sm:$0xf]
      %v260 = vld [vmem:[%s225 + $0x58] sm:$0xf]
      %v261 = vld [vmem:[%s225 + $0x5c] sm:$0xf]
      %v262 = vld [vmem:[%s225 + $0x60] sm:$0xf]
      %v263 = vld [vmem:[%s225 + $0x64] sm:$0xf]
      %v264 = vld [vmem:[%s225 + $0x68] sm:$0xf]
      %v265 = vld [vmem:[%s225 + $0x6c] sm:$0xf]
      %v266 = vld [vmem:[%s225 + $0x70] sm:$0xf]
      %v267 = vld [vmem:[%s225 + $0x74] sm:$0xf]
      %v268 = vld [vmem:[%s225 + $0x78] sm:$0xf]
      %v269 = vld [vmem:[%s225 + $0x7c] sm:$0xf]
      %v270 = vld [vmem:[%s225 + $0x80] sm:$0xf]
      %v271 = vld [vmem:[%s225 + $0x84] sm:$0xf]
      %v272 = vld [vmem:[%s225 + $0x88] sm:$0xf]
      %v273 = vld [vmem:[%s225 + $0x8c] sm:$0xf]
      %v274 = vld [vmem:[%s225 + $0x90] sm:$0xf]
      %v275 = vld [vmem:[%s225 + $0x94] sm:$0xf]
      %v276 = vld [vmem:[%s225 + $0x98] sm:$0xf]
      %v277 = vld [vmem:[%s225 + $0x9c] sm:$0xf]
      %v278 = vld [vmem:[%s225 + $0xa0] sm:$0xf]
      %v279 = vld [vmem:[%s225 + $0xa4] sm:$0xf]
      %v280 = vld [vmem:[%s225 + $0xa8] sm:$0xf]
      %v281 = vld [vmem:[%s225 + $0xac] sm:$0xf]
      %v282 = vld [vmem:[%s225 + $0xb0] sm:$0xf]
      %v283 = vld [vmem:[%s225 + $0xb4] sm:$0xf]
      %v284 = vld [vmem:[%s225 + $0xb8] sm:$0xf]
      %v285 = vld [vmem:[%s225 + $0xbc] sm:$0xf]
      %v286 = vld [vmem:[%s225 + $0xc0] sm:$0xf]
      %v287 = vld [vmem:[%s225 + $0xc4] sm:$0xf]
      %v288 = vld [vmem:[%s225 + $0xc8] sm:$0xf]
      %v289 = vld [vmem:[%s225 + $0xcc] sm:$0xf]
      %v290 = vld [vmem:[%s225 + $0xd0] sm:$0xf]
      %v291 = vld [vmem:[%s225 + $0xd4] sm:$0xf]
      %v292 = vld [vmem:[%s225 + $0xd8] sm:$0xf]
      %v293 = vld [vmem:[%s225 + $0xdc] sm:$0xf]
      %v294 = vld [vmem:[%s225 + $0xe0] sm:$0xf]
      %v295 = vld [vmem:[%s225 + $0xe4] sm:$0xf]
      %v296 = vld [vmem:[%s225 + $0xe8] sm:$0xf]
      %v297 = vld [vmem:[%s225 + $0xec] sm:$0xf]
      %v298 = vld [vmem:[%s225 + $0xf0] sm:$0xf]
      %v299 = vld [vmem:[%s225 + $0xf4] sm:$0xf]
      %v300 = vld [vmem:[%s225 + $0xf8] sm:$0xf]
      %v301 = vld [vmem:[%s225 + $0xfc] sm:$0xf]
      %v302 = vld [vmem:[%s1] sm:$0xf]
      %v303 = vld [vmem:[%s1 + $0x4] sm:$0xf]
      %v304 = vld [vmem:[%s1 + $0x8] sm:$0xf]
      %v305 = vld [vmem:[%s1 + $0xc] sm:$0xf]
      %v306 = vld [vmem:[%s1 + $0x10] sm:$0xf]
      %v307 = vld [vmem:[%s1 + $0x14] sm:$0xf]
      %v308 = vld [vmem:[%s1 + $0x18] sm:$0xf]
      %v309 = vld [vmem:[%s1 + $0x1c] sm:$0xf]
      %v310 = vld [vmem:[%s1 + $0x20] sm:$0xf]
      %v311 = vld [vmem:[%s1 + $0x24] sm:$0xf]
      %v312 = vld [vmem:[%s1 + $0x28] sm:$0xf]
      %v313 = vld [vmem:[%s1 + $0x2c] sm:$0xf]
      %v314 = vld [vmem:[%s1 + $0x30] sm:$0xf]
      %v315 = vld [vmem:[%s1 + $0x34] sm:$0x3]
      %v380 = vunpack.c.l.b16 %v238
      %v381 = vunpack.c.l.b16 %v239
      %v382 = vunpack.c.l.b16 %v240
      %v383 = vunpack.c.l.b16 %v241
      %v384 = vunpack.c.l.b16 %v242
      %v385 = vunpack.c.l.b16 %v243
      %v386 = vunpack.c.l.b16 %v244
      %v387 = vunpack.c.l.b16 %v245
      %v388 = vunpack.c.l.b16 %v246
      %v389 = vunpack.c.l.b16 %v247
      %v390 = vunpack.c.l.b16 %v248
      %v391 = vunpack.c.l.b16 %v249
      %v392 = vunpack.c.l.b16 %v250
      %v393 = vunpack.c.l.b16 %v251
      %v394 = vunpack.c.l.b16 %v252
      %v395 = vunpack.c.l.b16 %v253
      %v396 = vunpack.c.l.b16 %v254
      %v397 = vunpack.c.l.b16 %v255
      %v398 = vunpack.c.l.b16 %v256
      %v399 = vunpack.c.l.b16 %v257
      %v400 = vunpack.c.l.b16 %v258
      %v401 = vunpack.c.l.b16 %v259
      %v402 = vunpack.c.l.b16 %v260
      %v403 = vunpack.c.l.b16 %v261
      %v404 = vunpack.c.l.b16 %v262
      %v405 = vunpack.c.l.b16 %v263
      %v406 = vunpack.c.l.b16 %v264
      %v407 = vunpack.c.l.b16 %v265
      %v408 = vunpack.c.l.b16 %v266
      %v409 = vunpack.c.l.b16 %v267
      %v410 = vunpack.c.l.b16 %v268
      %v411 = vunpack.c.l.b16 %v269
      %v412 = vunpack.c.l.b16 %v270
      %v413 = vunpack.c.l.b16 %v271
      %v414 = vunpack.c.l.b16 %v272
      %v415 = vunpack.c.l.b16 %v273
      %v416 = vunpack.c.l.b16 %v274
      %v417 = vunpack.c.l.b16 %v275
      %v418 = vunpack.c.l.b16 %v276
      %v419 = vunpack.c.l.b16 %v277
      %v420 = vunpack.c.l.b16 %v278
      %v421 = vunpack.c.l.b16 %v279
      %v422 = vunpack.c.l.b16 %v280
      %v423 = vunpack.c.l.b16 %v281
      %v424 = vunpack.c.l.b16 %v282
      %v425 = vunpack.c.l.b16 %v283
      %v426 = vunpack.c.l.b16 %v284
      %v427 = vunpack.c.l.b16 %v285
      %v428 = vunpack.c.l.b16 %v286
      %v429 = vunpack.c.l.b16 %v287
      %v430 = vunpack.c.l.b16 %v288
      %v431 = vunpack.c.l.b16 %v289
      %v432 = vunpack.c.l.b16 %v290
      %v433 = vunpack.c.l.b16 %v291
      %v434 = vunpack.c.l.b16 %v292
      %v435 = vunpack.c.l.b16 %v293
      %v436 = vunpack.c.l.b16 %v294
      %v437 = vunpack.c.l.b16 %v295
      %v438 = vunpack.c.l.b16 %v296
      %v439 = vunpack.c.l.b16 %v297
      %v440 = vunpack.c.l.b16 %v298
      %v441 = vunpack.c.l.b16 %v299
      %v442 = vunpack.c.l.b16 %v300
      %v443 = vunpack.c.l.b16 %v301
      %v444 = vpack.c.b16 %v381, %v380
      %v445 = vpack.c.b16 %v383, %v382
      %v446 = vpack.c.b16 %v385, %v384
      %v447 = vpack.c.b16 %v387, %v386
      %v448 = vpack.c.b16 %v389, %v388
      %v449 = vpack.c.b16 %v391, %v390
      %v450 = vpack.c.b16 %v393, %v392
      %v451 = vpack.c.b16 %v395, %v394
      %v452 = vpack.c.b16 %v397, %v396
      %v453 = vpack.c.b16 %v399, %v398
      %v454 = vpack.c.b16 %v401, %v400
      %v455 = vpack.c.b16 %v403, %v402
      %v456 = vpack.c.b16 %v405, %v404
      %v457 = vpack.c.b16 %v407, %v406
      %v458 = vpack.c.b16 %v409, %v408
      %v459 = vpack.c.b16 %v411, %v410
      %v460 = vpack.c.b16 %v413, %v412
      %v461 = vpack.c.b16 %v415, %v414
      %v462 = vpack.c.b16 %v417, %v416
      %v463 = vpack.c.b16 %v419, %v418
      %v464 = vpack.c.b16 %v421, %v420
      %v465 = vpack.c.b16 %v423, %v422
      %v466 = vpack.c.b16 %v425, %v424
      %v467 = vpack.c.b16 %v427, %v426
      %v468 = vpack.c.b16 %v429, %v428
      %v469 = vpack.c.b16 %v431, %v430
      %v470 = vpack.c.b16 %v433, %v432
      %v471 = vpack.c.b16 %v435, %v434
      %v472 = vpack.c.b16 %v437, %v436
      %v473 = vpack.c.b16 %v439, %v438
      %v474 = vpack.c.b16 %v441, %v440
      %v475 = vpack.c.b16 %v443, %v442
      %v490 = vunpack.c.l.b16 %v302
      %v491 = vunpack.c.l.b16 %v303
      %v492 = vunpack.c.l.b16 %v304
      %v493 = vunpack.c.l.b16 %v305
      %v494 = vunpack.c.l.b16 %v306
      %v495 = vunpack.c.l.b16 %v307
      %v496 = vunpack.c.l.b16 %v308
      %v497 = vunpack.c.l.b16 %v309
      %v498 = vunpack.c.l.b16 %v310
      %v499 = vunpack.c.l.b16 %v311
      %v500 = vunpack.c.l.b16 %v312
      %v501 = vunpack.c.l.b16 %v313
      %v502 = vunpack.c.l.b16 %v314
      %v503 = vunpack.c.l.b16 %v315
      %v504 = vpack.c.b16 %v491, %v490
      %v505 = vpack.c.b16 %v493, %v492
      %v506 = vpack.c.b16 %v495, %v494
      %v507 = vpack.c.b16 %v497, %v496
      %v508 = vpack.c.b16 %v499, %v498
      %v509 = vpack.c.b16 %v501, %v500
      %v510 = vpack.c.b16 %v503, %v502
      %vm517 = vcmask 883712
      %v519 = vsel %vm517, %v444, 0
      %v522 = vsel %vm517, %v445, 0
      %v525 = vsel %vm517, %v446, 0
      %v528 = vsel %vm517, %v447, 0
      %v531 = vsel %vm517, %v448, 0
      %v534 = vsel %vm517, %v449, 0
      %v537 = vsel %vm517, %v450, 0
      %v540 = vsel %vm517, %v451, 0
      %v543 = vsel %vm517, %v452, 0
      %v546 = vsel %vm517, %v453, 0
      %v549 = vsel %vm517, %v454, 0
      %v552 = vsel %vm517, %v455, 0
      %v555 = vsel %vm517, %v456, 0
      %v558 = vsel %vm517, %v457, 0
      %v561 = vsel %vm517, %v458, 0
      %v564 = vsel %vm517, %v459, 0
      %v567 = vsel %vm517, %v460, 0
      %v570 = vsel %vm517, %v461, 0
      %v573 = vsel %vm517, %v462, 0
      %v576 = vsel %vm517, %v463, 0
      %v579 = vsel %vm517, %v464, 0
      %v582 = vsel %vm517, %v465, 0
      %v585 = vsel %vm517, %v466, 0
      %v588 = vsel %vm517, %v467, 0
      %v591 = vsel %vm517, %v468, 0
      %v594 = vsel %vm517, %v469, 0
      %v597 = vsel %vm517, %v470, 0
      %v600 = vsel %vm517, %v471, 0
      %v603 = vsel %vm517, %v472, 0
      %v606 = vsel %vm517, %v473, 0
      %v609 = vsel %vm517, %v474, 0
      %v612 = vsel %vm517, %v475, 0
      %vm614 = vcmask 1045504
      %v616 = vsel %vm614, %v510, 0
      %618 = vmatprep.subr.bf16.mxu0 0
      %619 = vmatpush1.bf16.msra.mxu0 0
      %620 = vmatprep.subr.bf16.mxu0 0
      %621 = vmatpush1.bf16.msra.mxu0 %v616
      %622 = vmatprep.subr.bf16.mxu0 0
      %623 = vmatpush1.bf16.msra.mxu0 %v509
      %624 = vmatprep.subr.bf16.mxu0 0
      %625 = vmatpush1.bf16.msra.mxu0 %v508
      %626 = vmatprep.subr.bf16.mxu0 0
      %627 = vmatpush1.bf16.msra.mxu0 %v507
      %628 = vmatprep.subr.bf16.mxu0 0
      %629 = vmatpush1.bf16.msra.mxu0 %v506
      %630 = vmatprep.subr.bf16.mxu0 0
      %631 = vmatpush1.bf16.msra.mxu0 %v505
      %632 = vmatprep.subr.bf16.mxu0 0
      %633 = vmatpush1.bf16.msra.mxu0 %v504
      %634 = vmatprep.subr.bf16.mxu0 0
      %635 = vmatpush2.bf16.msra.mxu0 0
      %636 = vmatprep.subr.bf16.mxu0 0
      %637 = vmatpush2.bf16.msra.mxu0 0
      %638 = vmatprep.subr.bf16.mxu0 0
      %639 = vmatpush2.bf16.msra.mxu0 0
      %640 = vmatprep.subr.bf16.mxu0 0
      %641 = vmatpush2.bf16.msra.mxu0 0
      %642 = vmatprep.subr.bf16.mxu0 0
      %643 = vmatpush2.bf16.msra.mxu0 0
      %644 = vmatprep.subr.bf16.mxu0 0
      %645 = vmatpush2.bf16.msra.mxu0 0
      %646 = vmatprep.subr.bf16.mxu0 0
      %647 = vmatpush2.bf16.msra.mxu0 0
      %648 = vmatprep.subr.bf16.mxu0 0
      %649 = vmatpush2.bf16.msra.mxu0 0
      %650 = vmatprep.mubr.bf16.mxu0 0
      %651 = vmatmul.mubr.bf16.gmra.mxu0 %v519
      %v652 = vpop.f32.mrf.mxu0
      %v653 = vadd.f32 0.0, %v652
      %v654 = vpop.f32.mrf.mxu0
      %v655 = vpop.f32.mrf.mxu0
      %v656 = vadd.f32 0.0, %v655
      %v657 = vpop.f32.mrf.mxu0
      %658 = vmatprep.mubr.bf16.mxu0 0
      %659 = vmatmul.mubr.bf16.gmra.mxu0 %v522
      %v660 = vpop.f32.mrf.mxu0
      %v661 = vadd.f32 0.0, %v660
      %v662 = vpop.f32.mrf.mxu0
      %v663 = vpop.f32.mrf.mxu0
      %v664 = vadd.f32 0.0, %v663
      %v665 = vpop.f32.mrf.mxu0
      %666 = vmatprep.mubr.bf16.mxu0 0
      %667 = vmatmul.mubr.bf16.gmra.mxu0 %v525
      %v668 = vpop.f32.mrf.mxu0
      %v669 = vadd.f32 0.0, %v668
      %v670 = vpop.f32.mrf.mxu0
      %v671 = vpop.f32.mrf.mxu0
      %v672 = vadd.f32 0.0, %v671
      %v673 = vpop.f32.mrf.mxu0
      %674 = vmatprep.mubr.bf16.mxu0 0
      %675 = vmatmul.mubr.bf16.gmra.mxu0 %v528
      %v676 = vpop.f32.mrf.mxu0
      %v677 = vadd.f32 0.0, %v676
      %v678 = vpop.f32.mrf.mxu0
      %v679 = vpop.f32.mrf.mxu0
      %v680 = vadd.f32 0.0, %v679
      %v681 = vpop.f32.mrf.mxu0
      %682 = vmatprep.mubr.bf16.mxu0 0
      %683 = vmatmul.mubr.bf16.gmra.mxu0 %v531
      %v684 = vpop.f32.mrf.mxu0
      %v685 = vadd.f32 0.0, %v684
      %v686 = vpop.f32.mrf.mxu0
      %v687 = vpop.f32.mrf.mxu0
      %v688 = vadd.f32 0.0, %v687
      %v689 = vpop.f32.mrf.mxu0
      %690 = vmatprep.mubr.bf16.mxu0 0
      %691 = vmatmul.mubr.bf16.gmra.mxu0 %v534
      %v692 = vpop.f32.mrf.mxu0
      %v693 = vadd.f32 0.0, %v692
      %v694 = vpop.f32.mrf.mxu0
      %v695 = vpop.f32.mrf.mxu0
      %v696 = vadd.f32 0.0, %v695
      %v697 = vpop.f32.mrf.mxu0
      %698 = vmatprep.mubr.bf16.mxu0 0
      %699 = vmatmul.mubr.bf16.gmra.mxu0 %v537
      %v700 = vpop.f32.mrf.mxu0
      %v701 = vadd.f32 0.0, %v700
      %v702 = vpop.f32.mrf.mxu0
      %v703 = vpop.f32.mrf.mxu0
      %v704 = vadd.f32 0.0, %v703
      %v705 = vpop.f32.mrf.mxu0
      %706 = vmatprep.mubr.bf16.mxu0 0
      %707 = vmatmul.mubr.bf16.gmra.mxu0 %v540
      %v708 = vpop.f32.mrf.mxu0
      %v709 = vadd.f32 0.0, %v708
      %v710 = vpop.f32.mrf.mxu0
      %v711 = vpop.f32.mrf.mxu0
      %v712 = vadd.f32 0.0, %v711
      %v713 = vpop.f32.mrf.mxu0
      %714 = vmatprep.mubr.bf16.mxu0 0
      %715 = vmatmul.mubr.bf16.gmra.mxu0 %v543
      %v716 = vpop.f32.mrf.mxu0
      %v717 = vadd.f32 0.0, %v716
      %v718 = vpop.f32.mrf.mxu0
      %v719 = vpop.f32.mrf.mxu0
      %v720 = vadd.f32 0.0, %v719
      %v721 = vpop.f32.mrf.mxu0
      %722 = vmatprep.mubr.bf16.mxu0 0
      %723 = vmatmul.mubr.bf16.gmra.mxu0 %v546
      %v724 = vpop.f32.mrf.mxu0
      %v725 = vadd.f32 0.0, %v724
      %v726 = vpop.f32.mrf.mxu0
      %v727 = vpop.f32.mrf.mxu0
      %v728 = vadd.f32 0.0, %v727
      %v729 = vpop.f32.mrf.mxu0
      %730 = vmatprep.mubr.bf16.mxu0 0
      %731 = vmatmul.mubr.bf16.gmra.mxu0 %v549
      %v732 = vpop.f32.mrf.mxu0
      %v733 = vadd.f32 0.0, %v732
      %v734 = vpop.f32.mrf.mxu0
      %v735 = vpop.f32.mrf.mxu0
      %v736 = vadd.f32 0.0, %v735
      %v737 = vpop.f32.mrf.mxu0
      %738 = vmatprep.mubr.bf16.mxu0 0
      %739 = vmatmul.mubr.bf16.gmra.mxu0 %v552
      %v740 = vpop.f32.mrf.mxu0
      %v741 = vadd.f32 0.0, %v740
      %v742 = vpop.f32.mrf.mxu0
      %v743 = vpop.f32.mrf.mxu0
      %v744 = vadd.f32 0.0, %v743
      %v745 = vpop.f32.mrf.mxu0
      %746 = vmatprep.mubr.bf16.mxu0 0
      %747 = vmatmul.mubr.bf16.gmra.mxu0 %v555
      %v748 = vpop.f32.mrf.mxu0
      %v749 = vadd.f32 0.0, %v748
      %v750 = vpop.f32.mrf.mxu0
      %v751 = vpop.f32.mrf.mxu0
      %v752 = vadd.f32 0.0, %v751
      %v753 = vpop.f32.mrf.mxu0
      %754 = vmatprep.mubr.bf16.mxu0 0
      %755 = vmatmul.mubr.bf16.gmra.mxu0 %v558
      %v756 = vpop.f32.mrf.mxu0
      %v757 = vadd.f32 0.0, %v756
      %v758 = vpop.f32.mrf.mxu0
      %v759 = vpop.f32.mrf.mxu0
      %v760 = vadd.f32 0.0, %v759
      %v761 = vpop.f32.mrf.mxu0
      %762 = vmatprep.mubr.bf16.mxu0 0
      %763 = vmatmul.mubr.bf16.gmra.mxu0 %v561
      %v764 = vpop.f32.mrf.mxu0
      %v765 = vadd.f32 0.0, %v764
      %v766 = vpop.f32.mrf.mxu0
      %v767 = vpop.f32.mrf.mxu0
      %v768 = vadd.f32 0.0, %v767
      %v769 = vpop.f32.mrf.mxu0
      %770 = vmatprep.mubr.bf16.mxu0 0
      %771 = vmatmul.mubr.bf16.gmra.mxu0 %v564
      %v772 = vpop.f32.mrf.mxu0
      %v773 = vadd.f32 0.0, %v772
      %v774 = vpop.f32.mrf.mxu0
      %v775 = vpop.f32.mrf.mxu0
      %v776 = vadd.f32 0.0, %v775
      %v777 = vpop.f32.mrf.mxu0
      %778 = vmatprep.mubr.bf16.mxu0 0
      %779 = vmatmul.mubr.bf16.gmra.mxu0 %v567
      %v780 = vpop.f32.mrf.mxu0
      %v781 = vadd.f32 0.0, %v780
      %v782 = vpop.f32.mrf.mxu0
      %v783 = vpop.f32.mrf.mxu0
      %v784 = vadd.f32 0.0, %v783
      %v785 = vpop.f32.mrf.mxu0
      %786 = vmatprep.mubr.bf16.mxu0 0
      %787 = vmatmul.mubr.bf16.gmra.mxu0 %v570
      %v788 = vpop.f32.mrf.mxu0
      %v789 = vadd.f32 0.0, %v788
      %v790 = vpop.f32.mrf.mxu0
      %v791 = vpop.f32.mrf.mxu0
      %v792 = vadd.f32 0.0, %v791
      %v793 = vpop.f32.mrf.mxu0
      %794 = vmatprep.mubr.bf16.mxu0 0
      %795 = vmatmul.mubr.bf16.gmra.mxu0 %v573
      %v796 = vpop.f32.mrf.mxu0
      %v797 = vadd.f32 0.0, %v796
      %v798 = vpop.f32.mrf.mxu0
      %v799 = vpop.f32.mrf.mxu0
      %v800 = vadd.f32 0.0, %v799
      %v801 = vpop.f32.mrf.mxu0
      %802 = vmatprep.mubr.bf16.mxu0 0
      %803 = vmatmul.mubr.bf16.gmra.mxu0 %v576
      %v804 = vpop.f32.mrf.mxu0
      %v805 = vadd.f32 0.0, %v804
      %v806 = vpop.f32.mrf.mxu0
      %v807 = vpop.f32.mrf.mxu0
      %v808 = vadd.f32 0.0, %v807
      %v809 = vpop.f32.mrf.mxu0
      %810 = vmatprep.mubr.bf16.mxu0 0
      %811 = vmatmul.mubr.bf16.gmra.mxu0 %v579
      %v812 = vpop.f32.mrf.mxu0
      %v813 = vadd.f32 0.0, %v812
      %v814 = vpop.f32.mrf.mxu0
      %v815 = vpop.f32.mrf.mxu0
      %v816 = vadd.f32 0.0, %v815
      %v817 = vpop.f32.mrf.mxu0
      %818 = vmatprep.mubr.bf16.mxu0 0
      %819 = vmatmul.mubr.bf16.gmra.mxu0 %v582
      %v820 = vpop.f32.mrf.mxu0
      %v821 = vadd.f32 0.0, %v820
      %v822 = vpop.f32.mrf.mxu0
      %v823 = vpop.f32.mrf.mxu0
      %v824 = vadd.f32 0.0, %v823
      %v825 = vpop.f32.mrf.mxu0
      %826 = vmatprep.mubr.bf16.mxu0 0
      %827 = vmatmul.mubr.bf16.gmra.mxu0 %v585
      %v828 = vpop.f32.mrf.mxu0
      %v829 = vadd.f32 0.0, %v828
      %v830 = vpop.f32.mrf.mxu0
      %v831 = vpop.f32.mrf.mxu0
      %v832 = vadd.f32 0.0, %v831
      %v833 = vpop.f32.mrf.mxu0
      %834 = vmatprep.mubr.bf16.mxu0 0
      %835 = vmatmul.mubr.bf16.gmra.mxu0 %v588
      %v836 = vpop.f32.mrf.mxu0
      %v837 = vadd.f32 0.0, %v836
      %v838 = vpop.f32.mrf.mxu0
      %v839 = vpop.f32.mrf.mxu0
      %v840 = vadd.f32 0.0, %v839
      %v841 = vpop.f32.mrf.mxu0
      %842 = vmatprep.mubr.bf16.mxu0 0
      %843 = vmatmul.mubr.bf16.gmra.mxu0 %v591
      %v844 = vpop.f32.mrf.mxu0
      %v845 = vadd.f32 0.0, %v844
      %v846 = vpop.f32.mrf.mxu0
      %v847 = vpop.f32.mrf.mxu0
      %v848 = vadd.f32 0.0, %v847
      %v849 = vpop.f32.mrf.mxu0
      %850 = vmatprep.mubr.bf16.mxu0 0
      %851 = vmatmul.mubr.bf16.gmra.mxu0 %v594
      %v852 = vpop.f32.mrf.mxu0
      %v853 = vadd.f32 0.0, %v852
      %v854 = vpop.f32.mrf.mxu0
      %v855 = vpop.f32.mrf.mxu0
      %v856 = vadd.f32 0.0, %v855
      %v857 = vpop.f32.mrf.mxu0
      %858 = vmatprep.mubr.bf16.mxu0 0
      %859 = vmatmul.mubr.bf16.gmra.mxu0 %v597
      %v860 = vpop.f32.mrf.mxu0
      %v861 = vadd.f32 0.0, %v860
      %v862 = vpop.f32.mrf.mxu0
      %v863 = vpop.f32.mrf.mxu0
      %v864 = vadd.f32 0.0, %v863
      %v865 = vpop.f32.mrf.mxu0
      %866 = vmatprep.mubr.bf16.mxu0 0
      %867 = vmatmul.mubr.bf16.gmra.mxu0 %v600
      %v868 = vpop.f32.mrf.mxu0
      %v869 = vadd.f32 0.0, %v868
      %v870 = vpop.f32.mrf.mxu0
      %v871 = vpop.f32.mrf.mxu0
      %v872 = vadd.f32 0.0, %v871
      %v873 = vpop.f32.mrf.mxu0
      %874 = vmatprep.mubr.bf16.mxu0 0
      %875 = vmatmul.mubr.bf16.gmra.mxu0 %v603
      %v876 = vpop.f32.mrf.mxu0
      %v877 = vadd.f32 0.0, %v876
      %v878 = vpop.f32.mrf.mxu0
      %v879 = vpop.f32.mrf.mxu0
      %v880 = vadd.f32 0.0, %v879
      %v881 = vpop.f32.mrf.mxu0
      %882 = vmatprep.mubr.bf16.mxu0 0
      %883 = vmatmul.mubr.bf16.gmra.mxu0 %v606
      %v884 = vpop.f32.mrf.mxu0
      %v885 = vadd.f32 0.0, %v884
      %v886 = vpop.f32.mrf.mxu0
      %v887 = vpop.f32.mrf.mxu0
      %v888 = vadd.f32 0.0, %v887
      %v889 = vpop.f32.mrf.mxu0
      %890 = vmatprep.mubr.bf16.mxu0 0
      %891 = vmatmul.mubr.bf16.gmra.mxu0 %v609
      %v892 = vpop.f32.mrf.mxu0
      %v893 = vadd.f32 0.0, %v892
      %v894 = vpop.f32.mrf.mxu0
      %v895 = vpop.f32.mrf.mxu0
      %v896 = vadd.f32 0.0, %v895
      %v897 = vpop.f32.mrf.mxu0
      %898 = vmatprep.mubr.bf16.mxu0 0
      %899 = vmatmul.mubr.bf16.gmra.mxu0 %v612
      %v900 = vpop.f32.mrf.mxu0
      %v901 = vadd.f32 0.0, %v900
      %v902 = vpop.f32.mrf.mxu0
      %v903 = vpop.f32.mrf.mxu0
      %v904 = vadd.f32 0.0, %v903
      %v905 = vpop.f32.mrf.mxu0
      %906 = vdwg.mxu0
      %v907 = vld [vmem:[%s2] sm:$0x1]
      %v909 = vlaneseq
      %v910 = vshrl.u32 %v909, 7
      %v911 = vsub.s32 0, %v910
      %v912 = vrot.slane %v907, %v911
      %v914 = vmul.f32 %v653, %v912
      %v915 = vmul.f32 %v656, %v912
      %v916 = vmul.f32 %v661, %v912
      %v917 = vmul.f32 %v664, %v912
      %v918 = vmul.f32 %v669, %v912
      %v919 = vmul.f32 %v672, %v912
      %v920 = vmul.f32 %v677, %v912
      %v921 = vmul.f32 %v680, %v912
      %v922 = vmul.f32 %v685, %v912
      %v923 = vmul.f32 %v688, %v912
      %v924 = vmul.f32 %v693, %v912
      %v925 = vmul.f32 %v696, %v912
      %v926 = vmul.f32 %v701, %v912
      %v927 = vmul.f32 %v704, %v912
      %v928 = vmul.f32 %v709, %v912
      %v929 = vmul.f32 %v712, %v912
      %v930 = vmul.f32 %v717, %v912
      %v931 = vmul.f32 %v720, %v912
      %v932 = vmul.f32 %v725, %v912
      %v933 = vmul.f32 %v728, %v912
      %v934 = vmul.f32 %v733, %v912
      %v935 = vmul.f32 %v736, %v912
      %v936 = vmul.f32 %v741, %v912
      %v937 = vmul.f32 %v744, %v912
      %v938 = vmul.f32 %v749, %v912
      %v939 = vmul.f32 %v752, %v912
      %v940 = vmul.f32 %v757, %v912
      %v941 = vmul.f32 %v760, %v912
      %v942 = vmul.f32 %v765, %v912
      %v943 = vmul.f32 %v768, %v912
      %v944 = vmul.f32 %v773, %v912
      %v945 = vmul.f32 %v776, %v912
      %v946 = vmul.f32 %v781, %v912
      %v947 = vmul.f32 %v784, %v912
      %v948 = vmul.f32 %v789, %v912
      %v949 = vmul.f32 %v792, %v912
      %v950 = vmul.f32 %v797, %v912
      %v951 = vmul.f32 %v800, %v912
      %v952 = vmul.f32 %v805, %v912
      %v953 = vmul.f32 %v808, %v912
      %v954 = vmul.f32 %v813, %v912
      %v955 = vmul.f32 %v816, %v912
      %v956 = vmul.f32 %v821, %v912
      %v957 = vmul.f32 %v824, %v912
      %v958 = vmul.f32 %v829, %v912
      %v959 = vmul.f32 %v832, %v912
      %v960 = vmul.f32 %v837, %v912
      %v961 = vmul.f32 %v840, %v912
      %v962 = vmul.f32 %v845, %v912
      %v963 = vmul.f32 %v848, %v912
      %v964 = vmul.f32 %v853, %v912
      %v965 = vmul.f32 %v856, %v912
      %v966 = vmul.f32 %v861, %v912
      %v967 = vmul.f32 %v864, %v912
      %v968 = vmul.f32 %v869, %v912
      %v969 = vmul.f32 %v872, %v912
      %v970 = vmul.f32 %v877, %v912
      %v971 = vmul.f32 %v880, %v912
      %v972 = vmul.f32 %v885, %v912
      %v973 = vmul.f32 %v888, %v912
      %v974 = vmul.f32 %v893, %v912
      %v975 = vmul.f32 %v896, %v912
      %v976 = vmul.f32 %v901, %v912
      %v977 = vmul.f32 %v904, %v912
      %v978 = vld [vmem:[%s3] sm:$0x1]
      %v980 = vlaneseq
      %v981 = vshrl.u32 %v980, 7
      %v982 = vsub.s32 0, %v981
      %v983 = vrot.slane %v978, %v982
      %v985 = vadd.f32 %v914, %v983
      %v986 = vadd.f32 %v915, %v983
      %v987 = vadd.f32 %v916, %v983
      %v988 = vadd.f32 %v917, %v983
      %v989 = vadd.f32 %v918, %v983
      %v990 = vadd.f32 %v919, %v983
      %v991 = vadd.f32 %v920, %v983
      %v992 = vadd.f32 %v921, %v983
      %v993 = vadd.f32 %v922, %v983
      %v994 = vadd.f32 %v923, %v983
      %v995 = vadd.f32 %v924, %v983
      %v996 = vadd.f32 %v925, %v983
      %v997 = vadd.f32 %v926, %v983
      %v998 = vadd.f32 %v927, %v983
      %v999 = vadd.f32 %v928, %v983
      %v1000 = vadd.f32 %v929, %v983
      %v1001 = vadd.f32 %v930, %v983
      %v1002 = vadd.f32 %v931, %v983
      %v1003 = vadd.f32 %v932, %v983
      %v1004 = vadd.f32 %v933, %v983
      %v1005 = vadd.f32 %v934, %v983
      %v1006 = vadd.f32 %v935, %v983
      %v1007 = vadd.f32 %v936, %v983
      %v1008 = vadd.f32 %v937, %v983
      %v1009 = vadd.f32 %v938, %v983
      %v1010 = vadd.f32 %v939, %v983
      %v1011 = vadd.f32 %v940, %v983
      %v1012 = vadd.f32 %v941, %v983
      %v1013 = vadd.f32 %v942, %v983
      %v1014 = vadd.f32 %v943, %v983
      %v1015 = vadd.f32 %v944, %v983
      %v1016 = vadd.f32 %v945, %v983
      %v1017 = vadd.f32 %v946, %v983
      %v1018 = vadd.f32 %v947, %v983
      %v1019 = vadd.f32 %v948, %v983
      %v1020 = vadd.f32 %v949, %v983
      %v1021 = vadd.f32 %v950, %v983
      %v1022 = vadd.f32 %v951, %v983
      %v1023 = vadd.f32 %v952, %v983
      %v1024 = vadd.f32 %v953, %v983
      %v1025 = vadd.f32 %v954, %v983
      %v1026 = vadd.f32 %v955, %v983
      %v1027 = vadd.f32 %v956, %v983
      %v1028 = vadd.f32 %v957, %v983
      %v1029 = vadd.f32 %v958, %v983
      %v1030 = vadd.f32 %v959, %v983
      %v1031 = vadd.f32 %v960, %v983
      %v1032 = vadd.f32 %v961, %v983
      %v1033 = vadd.f32 %v962, %v983
      %v1034 = vadd.f32 %v963, %v983
      %v1035 = vadd.f32 %v964, %v983
      %v1036 = vadd.f32 %v965, %v983
      %v1037 = vadd.f32 %v966, %v983
      %v1038 = vadd.f32 %v967, %v983
      %v1039 = vadd.f32 %v968, %v983
      %v1040 = vadd.f32 %v969, %v983
      %v1041 = vadd.f32 %v970, %v983
      %v1042 = vadd.f32 %v971, %v983
      %v1043 = vadd.f32 %v972, %v983
      %v1044 = vadd.f32 %v973, %v983
      %v1045 = vadd.f32 %v974, %v983
      %v1046 = vadd.f32 %v975, %v983
      %v1047 = vadd.f32 %v976, %v983
      %v1048 = vadd.f32 %v977, %v983
      %v1049 = vmax.f32 %v985, 0.0
      %v1050 = vmax.f32 %v986, 0.0
      %v1051 = vmax.f32 %v987, 0.0
      %v1052 = vmax.f32 %v988, 0.0
      %v1053 = vmax.f32 %v989, 0.0
      %v1054 = vmax.f32 %v990, 0.0
      %v1055 = vmax.f32 %v991, 0.0
      %v1056 = vmax.f32 %v992, 0.0
      %v1057 = vmax.f32 %v993, 0.0
      %v1058 = vmax.f32 %v994, 0.0
      %v1059 = vmax.f32 %v995, 0.0
      %v1060 = vmax.f32 %v996, 0.0
      %v1061 = vmax.f32 %v997, 0.0
      %v1062 = vmax.f32 %v998, 0.0
      %v1063 = vmax.f32 %v999, 0.0
      %v1064 = vmax.f32 %v1000, 0.0
      %v1065 = vmax.f32 %v1001, 0.0
      %v1066 = vmax.f32 %v1002, 0.0
      %v1067 = vmax.f32 %v1003, 0.0
      %v1068 = vmax.f32 %v1004, 0.0
      %v1069 = vmax.f32 %v1005, 0.0
      %v1070 = vmax.f32 %v1006, 0.0
      %v1071 = vmax.f32 %v1007, 0.0
      %v1072 = vmax.f32 %v1008, 0.0
      %v1073 = vmax.f32 %v1009, 0.0
      %v1074 = vmax.f32 %v1010, 0.0
      %v1075 = vmax.f32 %v1011, 0.0
      %v1076 = vmax.f32 %v1012, 0.0
      %v1077 = vmax.f32 %v1013, 0.0
      %v1078 = vmax.f32 %v1014, 0.0
      %v1079 = vmax.f32 %v1015, 0.0
      %v1080 = vmax.f32 %v1016, 0.0
      %v1081 = vmax.f32 %v1017, 0.0
      %v1082 = vmax.f32 %v1018, 0.0
      %v1083 = vmax.f32 %v1019, 0.0
      %v1084 = vmax.f32 %v1020, 0.0
      %v1085 = vmax.f32 %v1021, 0.0
      %v1086 = vmax.f32 %v1022, 0.0
      %v1087 = vmax.f32 %v1023, 0.0
      %v1088 = vmax.f32 %v1024, 0.0
      %v1089 = vmax.f32 %v1025, 0.0
      %v1090 = vmax.f32 %v1026, 0.0
      %v1091 = vmax.f32 %v1027, 0.0
      %v1092 = vmax.f32 %v1028, 0.0
      %v1093 = vmax.f32 %v1029, 0.0
      %v1094 = vmax.f32 %v1030, 0.0
      %v1095 = vmax.f32 %v1031, 0.0
      %v1096 = vmax.f32 %v1032, 0.0
      %v1097 = vmax.f32 %v1033, 0.0
      %v1098 = vmax.f32 %v1034, 0.0
      %v1099 = vmax.f32 %v1035, 0.0
      %v1100 = vmax.f32 %v1036, 0.0
      %v1101 = vmax.f32 %v1037, 0.0
      %v1102 = vmax.f32 %v1038, 0.0
      %v1103 = vmax.f32 %v1039, 0.0
      %v1104 = vmax.f32 %v1040, 0.0
      %v1105 = vmax.f32 %v1041, 0.0
      %v1106 = vmax.f32 %v1042, 0.0
      %v1107 = vmax.f32 %v1043, 0.0
      %v1108 = vmax.f32 %v1044, 0.0
      %v1109 = vmax.f32 %v1045, 0.0
      %v1110 = vmax.f32 %v1046, 0.0
      %v1111 = vmax.f32 %v1047, 0.0
      %v1112 = vmax.f32 %v1048, 0.0
      %v1113 = vpack.c.bf16 %v1050, %v1049
      %v1114 = vpack.c.bf16 %v1052, %v1051
      %v1115 = vpack.c.bf16 %v1054, %v1053
      %v1116 = vpack.c.bf16 %v1056, %v1055
      %v1117 = vpack.c.bf16 %v1058, %v1057
      %v1118 = vpack.c.bf16 %v1060, %v1059
      %v1119 = vpack.c.bf16 %v1062, %v1061
      %v1120 = vpack.c.bf16 %v1064, %v1063
      %v1121 = vpack.c.bf16 %v1066, %v1065
      %v1122 = vpack.c.bf16 %v1068, %v1067
      %v1123 = vpack.c.bf16 %v1070, %v1069
      %v1124 = vpack.c.bf16 %v1072, %v1071
      %v1125 = vpack.c.bf16 %v1074, %v1073
      %v1126 = vpack.c.bf16 %v1076, %v1075
      %v1127 = vpack.c.bf16 %v1078, %v1077
      %v1128 = vpack.c.bf16 %v1080, %v1079
      %v1129 = vpack.c.bf16 %v1082, %v1081
      %v1130 = vpack.c.bf16 %v1084, %v1083
      %v1131 = vpack.c.bf16 %v1086, %v1085
      %v1132 = vpack.c.bf16 %v1088, %v1087
      %v1133 = vpack.c.bf16 %v1090, %v1089
      %v1134 = vpack.c.bf16 %v1092, %v1091
      %v1135 = vpack.c.bf16 %v1094, %v1093
      %v1136 = vpack.c.bf16 %v1096, %v1095
      %v1137 = vpack.c.bf16 %v1098, %v1097
      %v1138 = vpack.c.bf16 %v1100, %v1099
      %v1139 = vpack.c.bf16 %v1102, %v1101
      %v1140 = vpack.c.bf16 %v1104, %v1103
      %v1141 = vpack.c.bf16 %v1106, %v1105
      %v1142 = vpack.c.bf16 %v1108, %v1107
      %v1143 = vpack.c.bf16 %v1110, %v1109
      %v1144 = vpack.c.bf16 %v1112, %v1111
      %v1177 = vunpack.c.l.b16 %v1113
      %v1178 = vunpack.c.h.b16 %v1113
      %v1179 = vunpack.c.l.b16 %v1114
      %v1180 = vunpack.c.h.b16 %v1114
      %v1181 = vunpack.c.l.b16 %v1115
      %v1182 = vunpack.c.h.b16 %v1115
      %v1183 = vunpack.c.l.b16 %v1116
      %v1184 = vunpack.c.h.b16 %v1116
      %v1185 = vunpack.c.l.b16 %v1117
      %v1186 = vunpack.c.h.b16 %v1117
      %v1187 = vunpack.c.l.b16 %v1118
      %v1188 = vunpack.c.h.b16 %v1118
      %v1189 = vunpack.c.l.b16 %v1119
      %v1190 = vunpack.c.h.b16 %v1119
      %v1191 = vunpack.c.l.b16 %v1120
      %v1192 = vunpack.c.h.b16 %v1120
      %v1193 = vunpack.c.l.b16 %v1121
      %v1194 = vunpack.c.h.b16 %v1121
      %v1195 = vunpack.c.l.b16 %v1122
      %v1196 = vunpack.c.h.b16 %v1122
      %v1197 = vunpack.c.l.b16 %v1123
      %v1198 = vunpack.c.h.b16 %v1123
      %v1199 = vunpack.c.l.b16 %v1124
      %v1200 = vunpack.c.h.b16 %v1124
      %v1201 = vunpack.c.l.b16 %v1125
      %v1202 = vunpack.c.h.b16 %v1125
      %v1203 = vunpack.c.l.b16 %v1126
      %v1204 = vunpack.c.h.b16 %v1126
      %v1205 = vunpack.c.l.b16 %v1127
      %v1206 = vunpack.c.h.b16 %v1127
      %v1207 = vunpack.c.l.b16 %v1128
      %v1208 = vunpack.c.h.b16 %v1128
      %v1209 = vunpack.c.l.b16 %v1129
      %v1210 = vunpack.c.h.b16 %v1129
      %v1211 = vunpack.c.l.b16 %v1130
      %v1212 = vunpack.c.h.b16 %v1130
      %v1213 = vunpack.c.l.b16 %v1131
      %v1214 = vunpack.c.h.b16 %v1131
      %v1215 = vunpack.c.l.b16 %v1132
      %v1216 = vunpack.c.h.b16 %v1132
      %v1217 = vunpack.c.l.b16 %v1133
      %v1218 = vunpack.c.h.b16 %v1133
      %v1219 = vunpack.c.l.b16 %v1134
      %v1220 = vunpack.c.h.b16 %v1134
      %v1221 = vunpack.c.l.b16 %v1135
      %v1222 = vunpack.c.h.b16 %v1135
      %v1223 = vunpack.c.l.b16 %v1136
      %v1224 = vunpack.c.h.b16 %v1136
      %v1225 = vunpack.c.l.b16 %v1137
      %v1226 = vunpack.c.h.b16 %v1137
      %v1227 = vunpack.c.l.b16 %v1138
      %v1228 = vunpack.c.h.b16 %v1138
      %v1229 = vunpack.c.l.b16 %v1139
      %v1230 = vunpack.c.h.b16 %v1139
      %v1231 = vunpack.c.l.b16 %v1140
      %v1232 = vunpack.c.h.b16 %v1140
      %v1233 = vunpack.c.l.b16 %v1141
      %v1234 = vunpack.c.h.b16 %v1141
      %v1235 = vunpack.c.l.b16 %v1142
      %v1236 = vunpack.c.h.b16 %v1142
      %v1237 = vunpack.c.l.b16 %v1143
      %v1238 = vunpack.c.h.b16 %v1143
      %v1239 = vunpack.c.l.b16 %v1144
      %v1240 = vunpack.c.h.b16 %v1144
      %v1241 = vpack.c.b16 %v1177, %v1177
      %v1242 = vpack.c.b16 %v1178, %v1178
      %v1243 = vpack.c.b16 %v1179, %v1179
      %v1244 = vpack.c.b16 %v1180, %v1180
      %v1245 = vpack.c.b16 %v1181, %v1181
      %v1246 = vpack.c.b16 %v1182, %v1182
      %v1247 = vpack.c.b16 %v1183, %v1183
      %v1248 = vpack.c.b16 %v1184, %v1184
      %v1249 = vpack.c.b16 %v1185, %v1185
      %v1250 = vpack.c.b16 %v1186, %v1186
      %v1251 = vpack.c.b16 %v1187, %v1187
      %v1252 = vpack.c.b16 %v1188, %v1188
      %v1253 = vpack.c.b16 %v1189, %v1189
      %v1254 = vpack.c.b16 %v1190, %v1190
      %v1255 = vpack.c.b16 %v1191, %v1191
      %v1256 = vpack.c.b16 %v1192, %v1192
      %v1257 = vpack.c.b16 %v1193, %v1193
      %v1258 = vpack.c.b16 %v1194, %v1194
      %v1259 = vpack.c.b16 %v1195, %v1195
      %v1260 = vpack.c.b16 %v1196, %v1196
      %v1261 = vpack.c.b16 %v1197, %v1197
      %v1262 = vpack.c.b16 %v1198, %v1198
      %v1263 = vpack.c.b16 %v1199, %v1199
      %v1264 = vpack.c.b16 %v1200, %v1200
      %v1265 = vpack.c.b16 %v1201, %v1201
      %v1266 = vpack.c.b16 %v1202, %v1202
      %v1267 = vpack.c.b16 %v1203, %v1203
      %v1268 = vpack.c.b16 %v1204, %v1204
      %v1269 = vpack.c.b16 %v1205, %v1205
      %v1270 = vpack.c.b16 %v1206, %v1206
      %v1271 = vpack.c.b16 %v1207, %v1207
      %v1272 = vpack.c.b16 %v1208, %v1208
      %v1273 = vpack.c.b16 %v1209, %v1209
      %v1274 = vpack.c.b16 %v1210, %v1210
      %v1275 = vpack.c.b16 %v1211, %v1211
      %v1276 = vpack.c.b16 %v1212, %v1212
      %v1277 = vpack.c.b16 %v1213, %v1213
      %v1278 = vpack.c.b16 %v1214, %v1214
      %v1279 = vpack.c.b16 %v1215, %v1215
      %v1280 = vpack.c.b16 %v1216, %v1216
      %v1281 = vpack.c.b16 %v1217, %v1217
      %v1282 = vpack.c.b16 %v1218, %v1218
      %v1283 = vpack.c.b16 %v1219, %v1219
      %v1284 = vpack.c.b16 %v1220, %v1220
      %v1285 = vpack.c.b16 %v1221, %v1221
      %v1286 = vpack.c.b16 %v1222, %v1222
      %v1287 = vpack.c.b16 %v1223, %v1223
      %v1288 = vpack.c.b16 %v1224, %v1224
      %v1289 = vpack.c.b16 %v1225, %v1225
      %v1290 = vpack.c.b16 %v1226, %v1226
      %v1291 = vpack.c.b16 %v1227, %v1227
      %v1292 = vpack.c.b16 %v1228, %v1228
      %v1293 = vpack.c.b16 %v1229, %v1229
      %v1294 = vpack.c.b16 %v1230, %v1230
      %v1295 = vpack.c.b16 %v1231, %v1231
      %v1296 = vpack.c.b16 %v1232, %v1232
      %v1297 = vpack.c.b16 %v1233, %v1233
      %v1298 = vpack.c.b16 %v1234, %v1234
      %v1299 = vpack.c.b16 %v1235, %v1235
      %v1300 = vpack.c.b16 %v1236, %v1236
      %v1301 = vpack.c.b16 %v1237, %v1237
      %v1302 = vpack.c.b16 %v1238, %v1238
      %v1303 = vpack.c.b16 %v1239, %v1239
      %v1304 = vpack.c.b16 %v1240, %v1240
      %vm1369 = vcmask 60416
      %1370 = vst.msk [vmem:[%s235] sm:$0xf] %vm1369, %v1241
      %1371 = vst.msk [vmem:[%s235 + $0x4] sm:$0xf] %vm1369, %v1242
      %1372 = vst.msk [vmem:[%s235 + $0x8] sm:$0xf] %vm1369, %v1243
      %1373 = vst.msk [vmem:[%s235 + $0xc] sm:$0xf] %vm1369, %v1244
      %1374 = vst.msk [vmem:[%s235 + $0x10] sm:$0xf] %vm1369, %v1245
      %1375 = vst.msk [vmem:[%s235 + $0x14] sm:$0xf] %vm1369, %v1246
      %1376 = vst.msk [vmem:[%s235 + $0x18] sm:$0xf] %vm1369, %v1247
      %1377 = vst.msk [vmem:[%s235 + $0x1c] sm:$0xf] %vm1369, %v1248
      %1378 = vst.msk [vmem:[%s235 + $0x20] sm:$0xf] %vm1369, %v1249
      %1379 = vst.msk [vmem:[%s235 + $0x24] sm:$0xf] %vm1369, %v1250
      %1380 = vst.msk [vmem:[%s235 + $0x28] sm:$0xf] %vm1369, %v1251
      %1381 = vst.msk [vmem:[%s235 + $0x2c] sm:$0xf] %vm1369, %v1252
      %1382 = vst.msk [vmem:[%s235 + $0x30] sm:$0xf] %vm1369, %v1253
      %1383 = vst.msk [vmem:[%s235 + $0x34] sm:$0xf] %vm1369, %v1254
      %1384 = vst.msk [vmem:[%s235 + $0x38] sm:$0xf] %vm1369, %v1255
      %1385 = vst.msk [vmem:[%s235 + $0x3c] sm:$0xf] %vm1369, %v1256
      %1386 = vst.msk [vmem:[%s235 + $0x40] sm:$0xf] %vm1369, %v1257
      %1387 = vst.msk [vmem:[%s235 + $0x44] sm:$0xf] %vm1369, %v1258
      %1388 = vst.msk [vmem:[%s235 + $0x48] sm:$0xf] %vm1369, %v1259
      %1389 = vst.msk [vmem:[%s235 + $0x4c] sm:$0xf] %vm1369, %v1260
      %1390 = vst.msk [vmem:[%s235 + $0x50] sm:$0xf] %vm1369, %v1261
      %1391 = vst.msk [vmem:[%s235 + $0x54] sm:$0xf] %vm1369, %v1262
      %1392 = vst.msk [vmem:[%s235 + $0x58] sm:$0xf] %vm1369, %v1263
      %1393 = vst.msk [vmem:[%s235 + $0x5c] sm:$0xf] %vm1369, %v1264
      %1394 = vst.msk [vmem:[%s235 + $0x60] sm:$0xf] %vm1369, %v1265
      %1395 = vst.msk [vmem:[%s235 + $0x64] sm:$0xf] %vm1369, %v1266
      %1396 = vst.msk [vmem:[%s235 + $0x68] sm:$0xf] %vm1369, %v1267
      %1397 = vst.msk [vmem:[%s235 + $0x6c] sm:$0xf] %vm1369, %v1268
      %1398 = vst.msk [vmem:[%s235 + $0x70] sm:$0xf] %vm1369, %v1269
      %1399 = vst.msk [vmem:[%s235 + $0x74] sm:$0xf] %vm1369, %v1270
      %1400 = vst.msk [vmem:[%s235 + $0x78] sm:$0xf] %vm1369, %v1271
      %1401 = vst.msk [vmem:[%s235 + $0x7c] sm:$0xf] %vm1369, %v1272
      %1402 = vst.msk [vmem:[%s235 + $0x80] sm:$0xf] %vm1369, %v1273
      %1403 = vst.msk [vmem:[%s235 + $0x84] sm:$0xf] %vm1369, %v1274
      %1404 = vst.msk [vmem:[%s235 + $0x88] sm:$0xf] %vm1369, %v1275
      %1405 = vst.msk [vmem:[%s235 + $0x8c] sm:$0xf] %vm1369, %v1276
      %1406 = vst.msk [vmem:[%s235 + $0x90] sm:$0xf] %vm1369, %v1277
      %1407 = vst.msk [vmem:[%s235 + $0x94] sm:$0xf] %vm1369, %v1278
      %1408 = vst.msk [vmem:[%s235 + $0x98] sm:$0xf] %vm1369, %v1279
      %1409 = vst.msk [vmem:[%s235 + $0x9c] sm:$0xf] %vm1369, %v1280
      %1410 = vst.msk [vmem:[%s235 + $0xa0] sm:$0xf] %vm1369, %v1281
      %1411 = vst.msk [vmem:[%s235 + $0xa4] sm:$0xf] %vm1369, %v1282
      %1412 = vst.msk [vmem:[%s235 + $0xa8] sm:$0xf] %vm1369, %v1283
      %1413 = vst.msk [vmem:[%s235 + $0xac] sm:$0xf] %vm1369, %v1284
      %1414 = vst.msk [vmem:[%s235 + $0xb0] sm:$0xf] %vm1369, %v1285
      %1415 = vst.msk [vmem:[%s235 + $0xb4] sm:$0xf] %vm1369, %v1286
      %1416 = vst.msk [vmem:[%s235 + $0xb8] sm:$0xf] %vm1369, %v1287
      %1417 = vst.msk [vmem:[%s235 + $0xbc] sm:$0xf] %vm1369, %v1288
      %1418 = vst.msk [vmem:[%s235 + $0xc0] sm:$0xf] %vm1369, %v1289
      %1419 = vst.msk [vmem:[%s235 + $0xc4] sm:$0xf] %vm1369, %v1290
      %1420 = vst.msk [vmem:[%s235 + $0xc8] sm:$0xf] %vm1369, %v1291
      %1421 = vst.msk [vmem:[%s235 + $0xcc] sm:$0xf] %vm1369, %v1292
      %1422 = vst.msk [vmem:[%s235 + $0xd0] sm:$0xf] %vm1369, %v1293
      %1423 = vst.msk [vmem:[%s235 + $0xd4] sm:$0xf] %vm1369, %v1294
      %1424 = vst.msk [vmem:[%s235 + $0xd8] sm:$0xf] %vm1369, %v1295
      %1425 = vst.msk [vmem:[%s235 + $0xdc] sm:$0xf] %vm1369, %v1296
      %1426 = vst.msk [vmem:[%s235 + $0xe0] sm:$0xf] %vm1369, %v1297
      %1427 = vst.msk [vmem:[%s235 + $0xe4] sm:$0xf] %vm1369, %v1298
      %1428 = vst.msk [vmem:[%s235 + $0xe8] sm:$0xf] %vm1369, %v1299
      %1429 = vst.msk [vmem:[%s235 + $0xec] sm:$0xf] %vm1369, %v1300
      %1430 = vst.msk [vmem:[%s235 + $0xf0] sm:$0xf] %vm1369, %v1301
      %1431 = vst.msk [vmem:[%s235 + $0xf4] sm:$0xf] %vm1369, %v1302
      %1432 = vst.msk [vmem:[%s235 + $0xf8] sm:$0xf] %vm1369, %v1303
      %1433 = vst.msk [vmem:[%s235 + $0xfc] sm:$0xf] %vm1369, %v1304
      %s1434 = smul.u32 64, %s20
      %p1435 = scmp.lt.s32.totalorder %s19, 1
      %s1436 = scalar_select %p1435, %s19, 1
      %p1437 = scmp.lt.s32.totalorder %s1434, 63
      %s1438 = scalar_select %p1437, %s1434, 63
      %s1439 = smul.addr %s1436, 64
      %s1440 = sadd.s32 %s1438, %s1439
      %s1441 = smul.addr %s1440, 4
      %s1442 = scalar_lea.vmem %s4, %s1441
      // Predicated region
      $region37: #{double_conv.2} parent=35 // pred_check
        %p1443 = pneg %p138
      $region38: #{double_conv.2} parent=35 // pred_check_branch
        %1445 = sbr.rel (%p1443) target = $region40
      $region39: #{double_conv.2} parent=35 // pred_region
        %s1446 = smul.u32 64, %s20
      $region40: #{double_conv.2} parent=35 // pred_fallthru
        _
    $region36: #{double_conv.2} parent=5 // pred_fallthru
      _
    %p1447 = scmp.le.s32.totalorder 2, %s10
    // Predicated region
    $region41: #{double_conv.2} parent=5 // pred_check
      %p1448 = pneg %p1447
    $region42: #{double_conv.2} parent=5 // pred_check_branch
      %1450 = sbr.rel (%p1448) target = $region44
    $region43: #{double_conv.2} parent=5 // pred_region
      %s1451 = ssub.s32 %s10, 2
      // Predicated region
      $region45: #{double_conv.2} parent=43 // pred_check
        %p1452 = pneg %p144
      $region46: #{double_conv.2} parent=43 // pred_check_branch
        %1454 = sbr.rel (%p1452) target = $region48
      $region47: #{double_conv.2} parent=43 // pred_region
        %s1455 = smul.u32 64, %s22
        %p1456 = scmp.lt.s32.totalorder %s21, 1
        %s1457 = scalar_select %p1456, %s21, 1
        %p1458 = scmp.lt.s32.totalorder %s1455, 63
        %s1459 = scalar_select %p1458, %s1455, 63
        %s1460 = smul.addr %s1457, 64
        %s1461 = sadd.s32 %s1459, %s1460
        %s1462 = smul.addr %s1461, 4
        %s1463 = scalar_lea.vmem %s4, %s1462
      $region48: #{double_conv.2} parent=43 // pred_fallthru
        _
    $region44: #{double_conv.2} parent=5 // pred_fallthru
      _
  $region6: #{double_conv.2} parent=0 // loop_footer
    %s14 = sadd.s32 1, %s10
  $region7: #{double_conv.2} parent=0 // loop_footer_branch
    %9 = sbr.rel target = $region3
  $region8: #{double_conv.2} parent=0 // loop_exit
    _

// kernel: double_conv.3
$region0: #{double_conv.3}
  #allocation0 [shape = 'u32[]', space=smem, size = 0x4, offset = 0x4, fixed_abs, tag = 'smem constant byte address 0x4 - core index']
  #allocation1 [shape = 'u32[144,128]{1,0:T(1,128)}', space=vmem, size = 0x12000, scoped, tag = 'internal scratch']
  %s0 = inlined_call_operand.vmem [shape: bf16[2,512,216], index: 0, kind: input, shape index: {}]
  %s1 = inlined_call_operand.vmem [shape: bf16[216,8], index: 1, kind: input, shape index: {}]
  %s2 = inlined_call_operand.vmem [shape: f32[1,8], index: 2, kind: input, shape index: {}]
  %s3 = inlined_call_operand.vmem [shape: f32[1,8], index: 3, kind: input, shape index: {}]
  %s4 = inlined_call_operand.vmem [shape: f32[2,512,8], index: 4, kind: output, shape index: {}]
  %s5 = sld [smem:[#allocation0]]
  $region49: #{double_conv.3} parent=0
    _
  %s7 = ssub.s32 1, %s5
  %s8 = scalar_select 0, %s7, %s5
  loop: start=0, step=1, limit=4
  $region2: #{double_conv.3} parent=0 // loop_pre_header
    _
  $region3: #{double_conv.3} parent=0 // loop_header
    %s10 = sphi 0, %s14
    %p11 = scmp.ge.s32.totalorder %s10, 4
    %s17 = sphi 0, %s29
    %s18 = sphi 0, %s25
    %s19 = sphi 0, %s17
    %s20 = sphi 0, %s18
    %s21 = sphi 0, %s19
    %s22 = sphi 0, %s20
    %s34 = sphi 0, %s36
    %s37 = sphi 0, %s34
    %s38 = sphi 0, %s37
    %s54 = sphi 0, %s38
    %s58 = sphi 0, %s58
    %s60 = sphi 0, %s58
    %s61 = sphi 0, %s60
    %s75 = sphi 0, %s61
    %s79 = sphi 0, %s79
    %s81 = sphi 0, %s79
    %s82 = sphi 0, %s81
    %s96 = sphi 0, %s82
    %s100 = sphi 0, %s100
    %s102 = sphi 0, %s100
    %s103 = sphi 0, %s102
    %s117 = sphi 0, %s103
    %s125 = sphi 0, %s127
    %s128 = sphi 0, %s125
    %s129 = sphi 0, %s128
    %s145 = sphi 0, %s129
  $region4: #{double_conv.3} parent=0 // loop_header_branch
    %13 = sbr.rel (%p11) target = $region8
  $region5: #{double_conv.3} parent=0 // loop_body
    %s15 = ssub.s32 %s10, 1
    %s16 = ssub.s32 %s10, 2
    %s23 = sadd.s32 1, %s18
    %p24 = scmp.ge.s32.totalorder %s23, 1
    %s25 = scalar_select %p24, 0, %s23
    %s26 = sadd.s32 1, %s17
    %s27 = scalar_select %p24, %s26, %s17
    %p28 = scmp.ge.s32.totalorder %s27, 2
    %s29 = scalar_select %p28, 0, %s27
    %s30 = ssub.s32 %s17, %s29
    %s31 = ssub.s32 %s18, %s25
    %s32 = sor.u32 %s30, %s31
    %p33 = scmp.eq.s32.totalorder %s32, 0
    %s35 = sadd.s32 %s34, 1
    %s36 = scalar_select %p33, %s34, %s35
    %p39 = pneg %p33
    %p40 = scmp.eq.s32.totalorder %s10, 1
    %p41 = por %p39, %p40
    %p42 = scmp.ne.s32.totalorder %s34, %s37
    %p43 = scmp.eq.s32.totalorder %s10, 0
    %p44 = por %p42, %p43
    %p45 = scmp.ne.s32.totalorder %s34, %s37
    %p46 = scmp.eq.s32.totalorder %s15, 1
    %p47 = por %p45, %p46
    %p48 = scmp.ne.s32.totalorder %s37, %s38
    %p49 = scmp.eq.s32.totalorder %s15, 0
    %p50 = por %p48, %p49
    %p51 = scmp.ne.s32.totalorder %s37, %s38
    %p52 = scmp.eq.s32.totalorder %s16, 1
    %p53 = por %p51, %p52
    %p55 = scmp.ne.s32.totalorder %s38, %s54
    %p56 = scmp.eq.s32.totalorder %s16, 0
    %p57 = por %p55, %p56
    %s59 = sadd.s32 %s58, 1
    %p62 = scmp.eq.s32.totalorder %s10, 1
    %p63 = scmp.ne.s32.totalorder %s58, %s60
    %p64 = scmp.eq.s32.totalorder %s10, 0
    %p65 = por %p63, %p64
    %p66 = scmp.ne.s32.totalorder %s58, %s60
    %p67 = scmp.eq.s32.totalorder %s15, 1
    %p68 = por %p66, %p67
    %p69 = scmp.ne.s32.totalorder %s60, %s61
    %p70 = scmp.eq.s32.totalorder %s15, 0
    %p71 = por %p69, %p70
    %p72 = scmp.ne.s32.totalorder %s60, %s61
    %p73 = scmp.eq.s32.totalorder %s16, 1
    %p74 = por %p72, %p73
    %p76 = scmp.ne.s32.totalorder %s61, %s75
    %p77 = scmp.eq.s32.totalorder %s16, 0
    %p78 = por %p76, %p77
    %s80 = sadd.s32 %s79, 1
    %p83 = scmp.eq.s32.totalorder %s10, 1
    %p84 = scmp.ne.s32.totalorder %s79, %s81
    %p85 = scmp.eq.s32.totalorder %s10, 0
    %p86 = por %p84, %p85
    %p87 = scmp.ne.s32.totalorder %s79, %s81
    %p88 = scmp.eq.s32.totalorder %s15, 1
    %p89 = por %p87, %p88
    %p90 = scmp.ne.s32.totalorder %s81, %s82
    %p91 = scmp.eq.s32.totalorder %s15, 0
    %p92 = por %p90, %p91
    %p93 = scmp.ne.s32.totalorder %s81, %s82
    %p94 = scmp.eq.s32.totalorder %s16, 1
    %p95 = por %p93, %p94
    %p97 = scmp.ne.s32.totalorder %s82, %s96
    %p98 = scmp.eq.s32.totalorder %s16, 0
    %p99 = por %p97, %p98
    %s101 = sadd.s32 %s100, 1
    %p104 = scmp.eq.s32.totalorder %s10, 1
    %p105 = scmp.ne.s32.totalorder %s100, %s102
    %p106 = scmp.eq.s32.totalorder %s10, 0
    %p107 = por %p105, %p106
    %p108 = scmp.ne.s32.totalorder %s100, %s102
    %p109 = scmp.eq.s32.totalorder %s15, 1
    %p110 = por %p108, %p109
    %p111 = scmp.ne.s32.totalorder %s102, %s103
    %p112 = scmp.eq.s32.totalorder %s15, 0
    %p113 = por %p111, %p112
    %p114 = scmp.ne.s32.totalorder %s102, %s103
    %p115 = scmp.eq.s32.totalorder %s16, 1
    %p116 = por %p114, %p115
    %p118 = scmp.ne.s32.totalorder %s103, %s117
    %p119 = scmp.eq.s32.totalorder %s16, 0
    %p120 = por %p118, %p119
    %s121 = ssub.s32 %s17, %s29
    %s122 = ssub.s32 %s18, %s25
    %s123 = sor.u32 %s121, %s122
    %p124 = scmp.eq.s32.totalorder %s123, 0
    %s126 = sadd.s32 %s125, 1
    %s127 = scalar_select %p124, %s125, %s126
    %p130 = pneg %p124
    %p131 = scmp.eq.s32.totalorder %s10, 1
    %p132 = por %p130, %p131
    %p133 = scmp.ne.s32.totalorder %s125, %s128
    %p134 = scmp.eq.s32.totalorder %s10, 0
    %p135 = por %p133, %p134
    %p136 = scmp.ne.s32.totalorder %s125, %s128
    %p137 = scmp.eq.s32.totalorder %s15, 1
    %p138 = por %p136, %p137
    %p139 = scmp.ne.s32.totalorder %s128, %s129
    %p140 = scmp.eq.s32.totalorder %s15, 0
    %p141 = por %p139, %p140
    %p142 = scmp.ne.s32.totalorder %s128, %s129
    %p143 = scmp.eq.s32.totalorder %s16, 1
    %p144 = por %p142, %p143
    %p146 = scmp.ne.s32.totalorder %s129, %s145
    %p147 = scmp.eq.s32.totalorder %s16, 0
    %p148 = por %p146, %p147
    %p149 = scmp.le.s32.totalorder 1, %s10
    %p150 = scmp.lt.s32.totalorder %s10, 3
    %p151 = pnand %p149, %p150
    %p152 = pneg %p151
    // Predicated region
    $region9: #{double_conv.3} parent=5 // pred_check
      _
    $region10: #{double_conv.3} parent=5 // pred_check_branch
      %154 = sbr.rel (%p151) target = $region12
    $region11: #{double_conv.3} parent=5 // pred_region
      %s155 = ssub.s32 %s10, 1
      // Predicated region
      $region13: #{double_conv.3} parent=11 // pred_check
        %p156 = pneg %p71
      $region14: #{double_conv.3} parent=11 // pred_check_branch
        %158 = sbr.rel (%p156) target = $region16
      $region15: #{double_conv.3} parent=11 // pred_region
        _
      $region16: #{double_conv.3} parent=11 // pred_fallthru
        _
      // Predicated region
      $region17: #{double_conv.3} parent=11 // pred_check
        %p159 = pneg %p92
      $region18: #{double_conv.3} parent=11 // pred_check_branch
        %161 = sbr.rel (%p159) target = $region20
      $region19: #{double_conv.3} parent=11 // pred_region
        _
      $region20: #{double_conv.3} parent=11 // pred_fallthru
        _
      // Predicated region
      $region21: #{double_conv.3} parent=11 // pred_check
        %p162 = pneg %p113
      $region22: #{double_conv.3} parent=11 // pred_check_branch
        %164 = sbr.rel (%p162) target = $region24
      $region23: #{double_conv.3} parent=11 // pred_region
        _
      $region24: #{double_conv.3} parent=11 // pred_fallthru
        _
    $region12: #{double_conv.3} parent=5 // pred_fallthru
      _
    %p165 = scmp.lt.s32.totalorder %s10, 2
    // Predicated region
    $region25: #{double_conv.3} parent=5 // pred_check
      %p166 = pneg %p165
    $region26: #{double_conv.3} parent=5 // pred_check_branch
      %168 = sbr.rel (%p166) target = $region28
    $region27: #{double_conv.3} parent=5 // pred_region
      // Predicated region
      $region29: #{double_conv.3} parent=27 // pred_check
        %p169 = pneg %p44
      $region30: #{double_conv.3} parent=27 // pred_check_branch
        %171 = sbr.rel (%p169) target = $region32
      $region31: #{double_conv.3} parent=27 // pred_region
        %s172 = smul.u32 64, %s18
        %p173 = scmp.lt.s32.totalorder %s17, 1
        %s174 = scalar_select %p173, %s17, 1
        %p175 = scmp.lt.s32.totalorder %s172, 63
        %s176 = scalar_select %p175, %s172, 63
        %s177 = smul.addr %s176, 2
        %s178 = smul.addr %s174, 128
        %s179 = sadd.s32 %s177, %s178
        %s180 = smul.addr %s179, 4
        %s181 = scalar_lea.vmem %s0, %s180
        %s182 = smul.u32 64, %s18
      $region32: #{double_conv.3} parent=27 // pred_fallthru
        _
    $region28: #{double_conv.3} parent=5 // pred_fallthru
      _
    %p183 = scmp.le.s32.totalorder 1, %s10
    %p184 = scmp.lt.s32.totalorder %s10, 3
    %p185 = pnand %p183, %p184
    %p186 = pneg %p185
    // Predicated region
    $region33: #{double_conv.3} parent=5 // pred_check
      _
    $region34: #{double_conv.3} parent=5 // pred_check_branch
      %188 = sbr.rel (%p185) target = $region36
    $region35: #{double_conv.3} parent=5 // pred_region
      %s189 = ssub.s32 %s10, 1
      %s190 = smul.u32 64, %s20
      %p191 = scmp.lt.s32.totalorder %s19, 1
      %s192 = scalar_select %p191, %s19, 1
      %p193 = scmp.lt.s32.totalorder %s190, 63
      %s194 = scalar_select %p193, %s190, 63
      %s195 = smul.addr %s194, 2
      %s196 = smul.addr %s192, 128
      %s197 = sadd.s32 %s195, %s196
      %s198 = smul.addr %s197, 4
      %s199 = scalar_lea.vmem %s0, %s198
      %p200 = pneg %p50
      %p201 = pneg %p47
      %p202 = pneg %p71
      %p203 = pneg %p68
      %p204 = pneg %p92
      %p205 = pneg %p89
      %p206 = pneg %p113
      %p207 = pneg %p110
      %p208 = pneg %p141
      %p209 = pneg %p138
      %s210 = smul.u32 64, %s20
      %p211 = scmp.lt.s32.totalorder %s19, 1
      %s212 = scalar_select %p211, %s19, 1
      %p213 = scmp.lt.s32.totalorder %s210, 63
      %s214 = scalar_select %p213, %s210, 63
      %s215 = smul.addr %s212, 64
      %s216 = sadd.s32 %s214, %s215
      %s217 = smul.addr %s216, 8
      %s218 = scalar_lea.vmem %s4, %s217
      %s219 = smul.u32 64, %s20
      %p220 = scmp.lt.s32.totalorder %s19, 1
      %s221 = scalar_select %p220, %s19, 1
      %p222 = scmp.lt.s32.totalorder %s219, 63
      %s223 = scalar_select %p222, %s219, 63
      %s224 = smul.addr %s223, 2
      %s225 = smul.addr %s221, 128
      %s226 = sadd.s32 %s224, %s225
      %s227 = smul.addr %s226, 4
      %s228 = scalar_lea.vmem %s0, %s227
      %s229 = smul.u32 64, %s20
      %s230 = smul.u32 64, %s20
      %p231 = scmp.lt.s32.totalorder %s19, 1
      %s232 = scalar_select %p231, %s19, 1
      %p233 = scmp.lt.s32.totalorder %s230, 63
      %s234 = scalar_select %p233, %s230, 63
      %s235 = smul.addr %s232, 64
      %s236 = sadd.s32 %s234, %s235
      %s237 = smul.addr %s236, 8
      %s238 = scalar_lea.vmem %s4, %s237
      %s239 = smul.u32 64, %s20
      %v241 = vld [vmem:[%s228] sm:$0xff]
      %v242 = vld [vmem:[%s228 + $0x8] sm:$0xff]
      %v243 = vld [vmem:[%s228 + $0x10] sm:$0xff]
      %v244 = vld [vmem:[%s228 + $0x18] sm:$0xff]
      %v245 = vld [vmem:[%s228 + $0x20] sm:$0xff]
      %v246 = vld [vmem:[%s228 + $0x28] sm:$0xff]
      %v247 = vld [vmem:[%s228 + $0x30] sm:$0xff]
      %v248 = vld [vmem:[%s228 + $0x38] sm:$0xff]
      %v249 = vld [vmem:[%s228 + $0x40] sm:$0xff]
      %v250 = vld [vmem:[%s228 + $0x48] sm:$0xff]
      %v251 = vld [vmem:[%s228 + $0x50] sm:$0xff]
      %v252 = vld [vmem:[%s228 + $0x58] sm:$0xff]
      %v253 = vld [vmem:[%s228 + $0x60] sm:$0xff]
      %v254 = vld [vmem:[%s228 + $0x68] sm:$0xff]
      %v255 = vld [vmem:[%s228 + $0x70] sm:$0xff]
      %v256 = vld [vmem:[%s228 + $0x78] sm:$0xff]
      %v257 = vld [vmem:[%s228 + $0x80] sm:$0xff]
      %v258 = vld [vmem:[%s228 + $0x88] sm:$0xff]
      %v259 = vld [vmem:[%s228 + $0x90] sm:$0xff]
      %v260 = vld [vmem:[%s228 + $0x98] sm:$0xff]
      %v261 = vld [vmem:[%s228 + $0xa0] sm:$0xff]
      %v262 = vld [vmem:[%s228 + $0xa8] sm:$0xff]
      %v263 = vld [vmem:[%s228 + $0xb0] sm:$0xff]
      %v264 = vld [vmem:[%s228 + $0xb8] sm:$0xff]
      %v265 = vld [vmem:[%s228 + $0xc0] sm:$0xff]
      %v266 = vld [vmem:[%s228 + $0xc8] sm:$0xff]
      %v267 = vld [vmem:[%s228 + $0xd0] sm:$0xff]
      %v268 = vld [vmem:[%s228 + $0xd8] sm:$0xff]
      %v269 = vld [vmem:[%s228 + $0xe0] sm:$0xff]
      %v270 = vld [vmem:[%s228 + $0xe8] sm:$0xff]
      %v271 = vld [vmem:[%s228 + $0xf0] sm:$0xff]
      %v272 = vld [vmem:[%s228 + $0xf8] sm:$0xff]
      %v273 = vld [vmem:[%s228 + $0x100] sm:$0xff]
      %v274 = vld [vmem:[%s228 + $0x108] sm:$0xff]
      %v275 = vld [vmem:[%s228 + $0x110] sm:$0xff]
      %v276 = vld [vmem:[%s228 + $0x118] sm:$0xff]
      %v277 = vld [vmem:[%s228 + $0x120] sm:$0xff]
      %v278 = vld [vmem:[%s228 + $0x128] sm:$0xff]
      %v279 = vld [vmem:[%s228 + $0x130] sm:$0xff]
      %v280 = vld [vmem:[%s228 + $0x138] sm:$0xff]
      %v281 = vld [vmem:[%s228 + $0x140] sm:$0xff]
      %v282 = vld [vmem:[%s228 + $0x148] sm:$0xff]
      %v283 = vld [vmem:[%s228 + $0x150] sm:$0xff]
      %v284 = vld [vmem:[%s228 + $0x158] sm:$0xff]
      %v285 = vld [vmem:[%s228 + $0x160] sm:$0xff]
      %v286 = vld [vmem:[%s228 + $0x168] sm:$0xff]
      %v287 = vld [vmem:[%s228 + $0x170] sm:$0xff]
      %v288 = vld [vmem:[%s228 + $0x178] sm:$0xff]
      %v289 = vld [vmem:[%s228 + $0x180] sm:$0xff]
      %v290 = vld [vmem:[%s228 + $0x188] sm:$0xff]
      %v291 = vld [vmem:[%s228 + $0x190] sm:$0xff]
      %v292 = vld [vmem:[%s228 + $0x198] sm:$0xff]
      %v293 = vld [vmem:[%s228 + $0x1a0] sm:$0xff]
      %v294 = vld [vmem:[%s228 + $0x1a8] sm:$0xff]
      %v295 = vld [vmem:[%s228 + $0x1b0] sm:$0xff]
      %v296 = vld [vmem:[%s228 + $0x1b8] sm:$0xff]
      %v297 = vld [vmem:[%s228 + $0x1c0] sm:$0xff]
      %v298 = vld [vmem:[%s228 + $0x1c8] sm:$0xff]
      %v299 = vld [vmem:[%s228 + $0x1d0] sm:$0xff]
      %v300 = vld [vmem:[%s228 + $0x1d8] sm:$0xff]
      %v301 = vld [vmem:[%s228 + $0x1e0] sm:$0xff]
      %v302 = vld [vmem:[%s228 + $0x1e8] sm:$0xff]
      %v303 = vld [vmem:[%s228 + $0x1f0] sm:$0xff]
      %v304 = vld [vmem:[%s228 + $0x1f8] sm:$0xff]
      %v305 = vld [vmem:[%s1] sm:$0xf]
      %v306 = vld [vmem:[%s1 + $0x4] sm:$0xf]
      %v307 = vld [vmem:[%s1 + $0x8] sm:$0xf]
      %v308 = vld [vmem:[%s1 + $0xc] sm:$0xf]
      %v309 = vld [vmem:[%s1 + $0x10] sm:$0xf]
      %v310 = vld [vmem:[%s1 + $0x14] sm:$0xf]
      %v311 = vld [vmem:[%s1 + $0x18] sm:$0xf]
      %v312 = vld [vmem:[%s1 + $0x1c] sm:$0xf]
      %v313 = vld [vmem:[%s1 + $0x20] sm:$0xf]
      %v314 = vld [vmem:[%s1 + $0x24] sm:$0xf]
      %v315 = vld [vmem:[%s1 + $0x28] sm:$0xf]
      %v316 = vld [vmem:[%s1 + $0x2c] sm:$0xf]
      %v317 = vld [vmem:[%s1 + $0x30] sm:$0xf]
      %v318 = vld [vmem:[%s1 + $0x34] sm:$0xf]
      %v319 = vld [vmem:[%s1 + $0x38] sm:$0xf]
      %v320 = vld [vmem:[%s1 + $0x3c] sm:$0xf]
      %v321 = vld [vmem:[%s1 + $0x40] sm:$0xf]
      %v322 = vld [vmem:[%s1 + $0x44] sm:$0xf]
      %v323 = vld [vmem:[%s1 + $0x48] sm:$0xf]
      %v324 = vld [vmem:[%s1 + $0x4c] sm:$0xf]
      %v325 = vld [vmem:[%s1 + $0x50] sm:$0xf]
      %v326 = vld [vmem:[%s1 + $0x54] sm:$0xf]
      %v327 = vld [vmem:[%s1 + $0x58] sm:$0xf]
      %v328 = vld [vmem:[%s1 + $0x5c] sm:$0xf]
      %v329 = vld [vmem:[%s1 + $0x60] sm:$0xf]
      %v330 = vld [vmem:[%s1 + $0x64] sm:$0xf]
      %v331 = vld [vmem:[%s1 + $0x68] sm:$0xf]
      %v396 = vunpack.c.l.b16 %v241
      %v397 = vunpack.c.h.b16 %v241
      %v398 = vunpack.c.l.b16 %v242
      %v399 = vunpack.c.h.b16 %v242
      %v400 = vunpack.c.l.b16 %v243
      %v401 = vunpack.c.h.b16 %v243
      %v402 = vunpack.c.l.b16 %v244
      %v403 = vunpack.c.h.b16 %v244
      %v404 = vunpack.c.l.b16 %v245
      %v405 = vunpack.c.h.b16 %v245
      %v406 = vunpack.c.l.b16 %v246
      %v407 = vunpack.c.h.b16 %v246
      %v408 = vunpack.c.l.b16 %v247
      %v409 = vunpack.c.h.b16 %v247
      %v410 = vunpack.c.l.b16 %v248
      %v411 = vunpack.c.h.b16 %v248
      %v412 = vunpack.c.l.b16 %v249
      %v413 = vunpack.c.h.b16 %v249
      %v414 = vunpack.c.l.b16 %v250
      %v415 = vunpack.c.h.b16 %v250
      %v416 = vunpack.c.l.b16 %v251
      %v417 = vunpack.c.h.b16 %v251
      %v418 = vunpack.c.l.b16 %v252
      %v419 = vunpack.c.h.b16 %v252
      %v420 = vunpack.c.l.b16 %v253
      %v421 = vunpack.c.h.b16 %v253
      %v422 = vunpack.c.l.b16 %v254
      %v423 = vunpack.c.h.b16 %v254
      %v424 = vunpack.c.l.b16 %v255
      %v425 = vunpack.c.h.b16 %v255
      %v426 = vunpack.c.l.b16 %v256
      %v427 = vunpack.c.h.b16 %v256
      %v428 = vunpack.c.l.b16 %v257
      %v429 = vunpack.c.h.b16 %v257
      %v430 = vunpack.c.l.b16 %v258
      %v431 = vunpack.c.h.b16 %v258
      %v432 = vunpack.c.l.b16 %v259
      %v433 = vunpack.c.h.b16 %v259
      %v434 = vunpack.c.l.b16 %v260
      %v435 = vunpack.c.h.b16 %v260
      %v436 = vunpack.c.l.b16 %v261
      %v437 = vunpack.c.h.b16 %v261
      %v438 = vunpack.c.l.b16 %v262
      %v439 = vunpack.c.h.b16 %v262
      %v440 = vunpack.c.l.b16 %v263
      %v441 = vunpack.c.h.b16 %v263
      %v442 = vunpack.c.l.b16 %v264
      %v443 = vunpack.c.h.b16 %v264
      %v444 = vunpack.c.l.b16 %v265
      %v445 = vunpack.c.h.b16 %v265
      %v446 = vunpack.c.l.b16 %v266
      %v447 = vunpack.c.h.b16 %v266
      %v448 = vunpack.c.l.b16 %v267
      %v449 = vunpack.c.h.b16 %v267
      %v450 = vunpack.c.l.b16 %v268
      %v451 = vunpack.c.h.b16 %v268
      %v452 = vunpack.c.l.b16 %v269
      %v453 = vunpack.c.h.b16 %v269
      %v454 = vunpack.c.l.b16 %v270
      %v455 = vunpack.c.h.b16 %v270
      %v456 = vunpack.c.l.b16 %v271
      %v457 = vunpack.c.h.b16 %v271
      %v458 = vunpack.c.l.b16 %v272
      %v459 = vunpack.c.h.b16 %v272
      %v460 = vunpack.c.l.b16 %v273
      %v461 = vunpack.c.h.b16 %v273
      %v462 = vunpack.c.l.b16 %v274
      %v463 = vunpack.c.h.b16 %v274
      %v464 = vunpack.c.l.b16 %v275
      %v465 = vunpack.c.h.b16 %v275
      %v466 = vunpack.c.l.b16 %v276
      %v467 = vunpack.c.h.b16 %v276
      %v468 = vunpack.c.l.b16 %v277
      %v469 = vunpack.c.h.b16 %v277
      %v470 = vunpack.c.l.b16 %v278
      %v471 = vunpack.c.h.b16 %v278
      %v472 = vunpack.c.l.b16 %v279
      %v473 = vunpack.c.h.b16 %v279
      %v474 = vunpack.c.l.b16 %v280
      %v475 = vunpack.c.h.b16 %v280
      %v476 = vunpack.c.l.b16 %v281
      %v477 = vunpack.c.h.b16 %v281
      %v478 = vunpack.c.l.b16 %v282
      %v479 = vunpack.c.h.b16 %v282
      %v480 = vunpack.c.l.b16 %v283
      %v481 = vunpack.c.h.b16 %v283
      %v482 = vunpack.c.l.b16 %v284
      %v483 = vunpack.c.h.b16 %v284
      %v484 = vunpack.c.l.b16 %v285
      %v485 = vunpack.c.h.b16 %v285
      %v486 = vunpack.c.l.b16 %v286
      %v487 = vunpack.c.h.b16 %v286
      %v488 = vunpack.c.l.b16 %v287
      %v489 = vunpack.c.h.b16 %v287
      %v490 = vunpack.c.l.b16 %v288
      %v491 = vunpack.c.h.b16 %v288
      %v492 = vunpack.c.l.b16 %v289
      %v493 = vunpack.c.h.b16 %v289
      %v494 = vunpack.c.l.b16 %v290
      %v495 = vunpack.c.h.b16 %v290
      %v496 = vunpack.c.l.b16 %v291
      %v497 = vunpack.c.h.b16 %v291
      %v498 = vunpack.c.l.b16 %v292
      %v499 = vunpack.c.h.b16 %v292
      %v500 = vunpack.c.l.b16 %v293
      %v501 = vunpack.c.h.b16 %v293
      %v502 = vunpack.c.l.b16 %v294
      %v503 = vunpack.c.h.b16 %v294
      %v504 = vunpack.c.l.b16 %v295
      %v505 = vunpack.c.h.b16 %v295
      %v506 = vunpack.c.l.b16 %v296
      %v507 = vunpack.c.h.b16 %v296
      %v508 = vunpack.c.l.b16 %v297
      %v509 = vunpack.c.h.b16 %v297
      %v510 = vunpack.c.l.b16 %v298
      %v511 = vunpack.c.h.b16 %v298
      %v512 = vunpack.c.l.b16 %v299
      %v513 = vunpack.c.h.b16 %v299
      %v514 = vunpack.c.l.b16 %v300
      %v515 = vunpack.c.h.b16 %v300
      %v516 = vunpack.c.l.b16 %v301
      %v517 = vunpack.c.h.b16 %v301
      %v518 = vunpack.c.l.b16 %v302
      %v519 = vunpack.c.h.b16 %v302
      %v520 = vunpack.c.l.b16 %v303
      %v521 = vunpack.c.h.b16 %v303
      %v522 = vunpack.c.l.b16 %v304
      %v523 = vunpack.c.h.b16 %v304
      %v524 = vpack.c.b16 %v398, %v396
      %v525 = vpack.c.b16 %v399, %v397
      %v526 = vpack.c.b16 %v402, %v400
      %v527 = vpack.c.b16 %v403, %v401
      %v528 = vpack.c.b16 %v406, %v404
      %v529 = vpack.c.b16 %v407, %v405
      %v530 = vpack.c.b16 %v410, %v408
      %v531 = vpack.c.b16 %v411, %v409
      %v532 = vpack.c.b16 %v414, %v412
      %v533 = vpack.c.b16 %v415, %v413
      %v534 = vpack.c.b16 %v418, %v416
      %v535 = vpack.c.b16 %v419, %v417
      %v536 = vpack.c.b16 %v422, %v420
      %v537 = vpack.c.b16 %v423, %v421
      %v538 = vpack.c.b16 %v426, %v424
      %v539 = vpack.c.b16 %v427, %v425
      %v540 = vpack.c.b16 %v430, %v428
      %v541 = vpack.c.b16 %v431, %v429
      %v542 = vpack.c.b16 %v434, %v432
      %v543 = vpack.c.b16 %v435, %v433
      %v544 = vpack.c.b16 %v438, %v436
      %v545 = vpack.c.b16 %v439, %v437
      %v546 = vpack.c.b16 %v442, %v440
      %v547 = vpack.c.b16 %v443, %v441
      %v548 = vpack.c.b16 %v446, %v444
      %v549 = vpack.c.b16 %v447, %v445
      %v550 = vpack.c.b16 %v450, %v448
      %v551 = vpack.c.b16 %v451, %v449
      %v552 = vpack.c.b16 %v454, %v452
      %v553 = vpack.c.b16 %v455, %v453
      %v554 = vpack.c.b16 %v458, %v456
      %v555 = vpack.c.b16 %v459, %v457
      %v556 = vpack.c.b16 %v462, %v460
      %v557 = vpack.c.b16 %v463, %v461
      %v558 = vpack.c.b16 %v466, %v464
      %v559 = vpack.c.b16 %v467, %v465
      %v560 = vpack.c.b16 %v470, %v468
      %v561 = vpack.c.b16 %v471, %v469
      %v562 = vpack.c.b16 %v474, %v472
      %v563 = vpack.c.b16 %v475, %v473
      %v564 = vpack.c.b16 %v478, %v476
      %v565 = vpack.c.b16 %v479, %v477
      %v566 = vpack.c.b16 %v482, %v480
      %v567 = vpack.c.b16 %v483, %v481
      %v568 = vpack.c.b16 %v486, %v484
      %v569 = vpack.c.b16 %v487, %v485
      %v570 = vpack.c.b16 %v490, %v488
      %v571 = vpack.c.b16 %v491, %v489
      %v572 = vpack.c.b16 %v494, %v492
      %v573 = vpack.c.b16 %v495, %v493
      %v574 = vpack.c.b16 %v498, %v496
      %v575 = vpack.c.b16 %v499, %v497
      %v576 = vpack.c.b16 %v502, %v500
      %v577 = vpack.c.b16 %v503, %v501
      %v578 = vpack.c.b16 %v506, %v504
      %v579 = vpack.c.b16 %v507, %v505
      %v580 = vpack.c.b16 %v510, %v508
      %v581 = vpack.c.b16 %v511, %v509
      %v582 = vpack.c.b16 %v514, %v512
      %v583 = vpack.c.b16 %v515, %v513
      %v584 = vpack.c.b16 %v518, %v516
      %v585 = vpack.c.b16 %v519, %v517
      %v586 = vpack.c.b16 %v522, %v520
      %v587 = vpack.c.b16 %v523, %v521
      %v647 = vunpack.c.l.b16 %v305
      %v648 = vunpack.c.l.b16 %v306
      %v649 = vunpack.c.l.b16 %v307
      %v650 = vunpack.c.l.b16 %v308
      %v651 = vunpack.c.l.b16 %v309
      %v652 = vunpack.c.l.b16 %v310
      %v653 = vunpack.c.l.b16 %v311
      %v654 = vunpack.c.l.b16 %v312
      %v655 = vunpack.c.l.b16 %v313
      %v656 = vunpack.c.l.b16 %v314
      %v657 = vunpack.c.l.b16 %v315
      %v658 = vunpack.c.l.b16 %v316
      %v659 = vunpack.c.l.b16 %v317
      %v660 = vunpack.c.l.b16 %v318
      %v661 = vunpack.c.l.b16 %v319
      %v662 = vunpack.c.l.b16 %v320
      %v663 = vunpack.c.l.b16 %v321
      %v664 = vunpack.c.l.b16 %v322
      %v665 = vunpack.c.l.b16 %v323
      %v666 = vunpack.c.l.b16 %v324
      %v667 = vunpack.c.l.b16 %v325
      %v668 = vunpack.c.l.b16 %v326
      %v669 = vunpack.c.l.b16 %v327
      %v670 = vunpack.c.l.b16 %v328
      %v671 = vunpack.c.l.b16 %v329
      %v672 = vunpack.c.l.b16 %v330
      %v673 = vunpack.c.l.b16 %v331
      %v674 = vpack.c.b16 %v648, %v647
      %v675 = vpack.c.b16 %v650, %v649
      %v676 = vpack.c.b16 %v652, %v651
      %v677 = vpack.c.b16 %v654, %v653
      %v678 = vpack.c.b16 %v656, %v655
      %v679 = vpack.c.b16 %v658, %v657
      %v680 = vpack.c.b16 %v660, %v659
      %v681 = vpack.c.b16 %v662, %v661
      %v682 = vpack.c.b16 %v664, %v663
      %v683 = vpack.c.b16 %v666, %v665
      %v684 = vpack.c.b16 %v668, %v667
      %v685 = vpack.c.b16 %v670, %v669
      %v686 = vpack.c.b16 %v672, %v671
      %v687 = vpack.c.b16 %v673, %v673
      %vm701 = vcmask 719872
      %v703 = vsel %vm701, %v525, 0
      %v706 = vsel %vm701, %v527, 0
      %v709 = vsel %vm701, %v529, 0
      %v712 = vsel %vm701, %v531, 0
      %v715 = vsel %vm701, %v533, 0
      %v718 = vsel %vm701, %v535, 0
      %v721 = vsel %vm701, %v537, 0
      %v724 = vsel %vm701, %v539, 0
      %v727 = vsel %vm701, %v541, 0
      %v730 = vsel %vm701, %v543, 0
      %v733 = vsel %vm701, %v545, 0
      %v736 = vsel %vm701, %v547, 0
      %v739 = vsel %vm701, %v549, 0
      %v742 = vsel %vm701, %v551, 0
      %v745 = vsel %vm701, %v553, 0
      %v748 = vsel %vm701, %v555, 0
      %v751 = vsel %vm701, %v557, 0
      %v754 = vsel %vm701, %v559, 0
      %v757 = vsel %vm701, %v561, 0
      %v760 = vsel %vm701, %v563, 0
      %v763 = vsel %vm701, %v565, 0
      %v766 = vsel %vm701, %v567, 0
      %v769 = vsel %vm701, %v569, 0
      %v772 = vsel %vm701, %v571, 0
      %v775 = vsel %vm701, %v573, 0
      %v778 = vsel %vm701, %v575, 0
      %v781 = vsel %vm701, %v577, 0
      %v784 = vsel %vm701, %v579, 0
      %v787 = vsel %vm701, %v581, 0
      %v790 = vsel %vm701, %v583, 0
      %v793 = vsel %vm701, %v585, 0
      %v796 = vsel %vm701, %v587, 0
      %vm798 = vcmask 1043456
      %v800 = vsel %vm798, %v687, 0
      %802 = vmatprep.subr.bf16.mxu0 0
      %803 = vmatpush1.bf16.msra.mxu0 %v681
      %804 = vmatprep.subr.bf16.mxu0 0
      %805 = vmatpush1.bf16.msra.mxu0 %v680
      %806 = vmatprep.subr.bf16.mxu0 0
      %807 = vmatpush1.bf16.msra.mxu0 %v679
      %808 = vmatprep.subr.bf16.mxu0 0
      %809 = vmatpush1.bf16.msra.mxu0 %v678
      %810 = vmatprep.subr.bf16.mxu0 0
      %811 = vmatpush1.bf16.msra.mxu0 %v677
      %812 = vmatprep.subr.bf16.mxu0 0
      %813 = vmatpush1.bf16.msra.mxu0 %v676
      %814 = vmatprep.subr.bf16.mxu0 0
      %815 = vmatpush1.bf16.msra.mxu0 %v675
      %816 = vmatprep.subr.bf16.mxu0 0
      %817 = vmatpush1.bf16.msra.mxu0 %v674
      %818 = vmatprep.subr.bf16.mxu0 0
      %819 = vmatpush2.bf16.msra.mxu0 0
      %820 = vmatprep.subr.bf16.mxu0 0
      %821 = vmatpush2.bf16.msra.mxu0 0
      %822 = vmatprep.subr.bf16.mxu0 0
      %823 = vmatpush2.bf16.msra.mxu0 %v800
      %824 = vmatprep.subr.bf16.mxu0 0
      %825 = vmatpush2.bf16.msra.mxu0 %v686
      %826 = vmatprep.subr.bf16.mxu0 0
      %827 = vmatpush2.bf16.msra.mxu0 %v685
      %828 = vmatprep.subr.bf16.mxu0 0
      %829 = vmatpush2.bf16.msra.mxu0 %v684
      %830 = vmatprep.subr.bf16.mxu0 0
      %831 = vmatpush2.bf16.msra.mxu0 %v683
      %832 = vmatprep.subr.bf16.mxu0 0
      %833 = vmatpush2.bf16.msra.mxu0 %v682
      %834 = vmatprep.mubr.bf16.mxu0 %v703
      %835 = vmatmul.mubr.bf16.gmra.mxu0 %v524
      %v836 = vpop.f32.mrf.mxu0
      %v837 = vadd.f32 0.0, %v836
      %v838 = vpop.f32.mrf.mxu0
      %v839 = vpop.f32.mrf.mxu0
      %v840 = vadd.f32 0.0, %v839
      %v841 = vpop.f32.mrf.mxu0
      %842 = vmatprep.mubr.bf16.mxu0 %v706
      %843 = vmatmul.mubr.bf16.gmra.mxu0 %v526
      %v844 = vpop.f32.mrf.mxu0
      %v845 = vadd.f32 0.0, %v844
      %v846 = vpop.f32.mrf.mxu0
      %v847 = vpop.f32.mrf.mxu0
      %v848 = vadd.f32 0.0, %v847
      %v849 = vpop.f32.mrf.mxu0
      %850 = vmatprep.mubr.bf16.mxu0 %v709
      %851 = vmatmul.mubr.bf16.gmra.mxu0 %v528
      %v852 = vpop.f32.mrf.mxu0
      %v853 = vadd.f32 0.0, %v852
      %v854 = vpop.f32.mrf.mxu0
      %v855 = vpop.f32.mrf.mxu0
      %v856 = vadd.f32 0.0, %v855
      %v857 = vpop.f32.mrf.mxu0
      %858 = vmatprep.mubr.bf16.mxu0 %v712
      %859 = vmatmul.mubr.bf16.gmra.mxu0 %v530
      %v860 = vpop.f32.mrf.mxu0
      %v861 = vadd.f32 0.0, %v860
      %v862 = vpop.f32.mrf.mxu0
      %v863 = vpop.f32.mrf.mxu0
      %v864 = vadd.f32 0.0, %v863
      %v865 = vpop.f32.mrf.mxu0
      %866 = vmatprep.mubr.bf16.mxu0 %v715
      %867 = vmatmul.mubr.bf16.gmra.mxu0 %v532
      %v868 = vpop.f32.mrf.mxu0
      %v869 = vadd.f32 0.0, %v868
      %v870 = vpop.f32.mrf.mxu0
      %v871 = vpop.f32.mrf.mxu0
      %v872 = vadd.f32 0.0, %v871
      %v873 = vpop.f32.mrf.mxu0
      %874 = vmatprep.mubr.bf16.mxu0 %v718
      %875 = vmatmul.mubr.bf16.gmra.mxu0 %v534
      %v876 = vpop.f32.mrf.mxu0
      %v877 = vadd.f32 0.0, %v876
      %v878 = vpop.f32.mrf.mxu0
      %v879 = vpop.f32.mrf.mxu0
      %v880 = vadd.f32 0.0, %v879
      %v881 = vpop.f32.mrf.mxu0
      %882 = vmatprep.mubr.bf16.mxu0 %v721
      %883 = vmatmul.mubr.bf16.gmra.mxu0 %v536
      %v884 = vpop.f32.mrf.mxu0
      %v885 = vadd.f32 0.0, %v884
      %v886 = vpop.f32.mrf.mxu0
      %v887 = vpop.f32.mrf.mxu0
      %v888 = vadd.f32 0.0, %v887
      %v889 = vpop.f32.mrf.mxu0
      %890 = vmatprep.mubr.bf16.mxu0 %v724
      %891 = vmatmul.mubr.bf16.gmra.mxu0 %v538
      %v892 = vpop.f32.mrf.mxu0
      %v893 = vadd.f32 0.0, %v892
      %v894 = vpop.f32.mrf.mxu0
      %v895 = vpop.f32.mrf.mxu0
      %v896 = vadd.f32 0.0, %v895
      %v897 = vpop.f32.mrf.mxu0
      %898 = vmatprep.mubr.bf16.mxu0 %v727
      %899 = vmatmul.mubr.bf16.gmra.mxu0 %v540
      %v900 = vpop.f32.mrf.mxu0
      %v901 = vadd.f32 0.0, %v900
      %v902 = vpop.f32.mrf.mxu0
      %v903 = vpop.f32.mrf.mxu0
      %v904 = vadd.f32 0.0, %v903
      %v905 = vpop.f32.mrf.mxu0
      %906 = vmatprep.mubr.bf16.mxu0 %v730
      %907 = vmatmul.mubr.bf16.gmra.mxu0 %v542
      %v908 = vpop.f32.mrf.mxu0
      %v909 = vadd.f32 0.0, %v908
      %v910 = vpop.f32.mrf.mxu0
      %v911 = vpop.f32.mrf.mxu0
      %v912 = vadd.f32 0.0, %v911
      %v913 = vpop.f32.mrf.mxu0
      %914 = vmatprep.mubr.bf16.mxu0 %v733
      %915 = vmatmul.mubr.bf16.gmra.mxu0 %v544
      %v916 = vpop.f32.mrf.mxu0
      %v917 = vadd.f32 0.0, %v916
      %v918 = vpop.f32.mrf.mxu0
      %v919 = vpop.f32.mrf.mxu0
      %v920 = vadd.f32 0.0, %v919
      %v921 = vpop.f32.mrf.mxu0
      %922 = vmatprep.mubr.bf16.mxu0 %v736
      %923 = vmatmul.mubr.bf16.gmra.mxu0 %v546
      %v924 = vpop.f32.mrf.mxu0
      %v925 = vadd.f32 0.0, %v924
      %v926 = vpop.f32.mrf.mxu0
      %v927 = vpop.f32.mrf.mxu0
      %v928 = vadd.f32 0.0, %v927
      %v929 = vpop.f32.mrf.mxu0
      %930 = vmatprep.mubr.bf16.mxu0 %v739
      %931 = vmatmul.mubr.bf16.gmra.mxu0 %v548
      %v932 = vpop.f32.mrf.mxu0
      %v933 = vadd.f32 0.0, %v932
      %v934 = vpop.f32.mrf.mxu0
      %v935 = vpop.f32.mrf.mxu0
      %v936 = vadd.f32 0.0, %v935
      %v937 = vpop.f32.mrf.mxu0
      %938 = vmatprep.mubr.bf16.mxu0 %v742
      %939 = vmatmul.mubr.bf16.gmra.mxu0 %v550
      %v940 = vpop.f32.mrf.mxu0
      %v941 = vadd.f32 0.0, %v940
      %v942 = vpop.f32.mrf.mxu0
      %v943 = vpop.f32.mrf.mxu0
      %v944 = vadd.f32 0.0, %v943
      %v945 = vpop.f32.mrf.mxu0
      %946 = vmatprep.mubr.bf16.mxu0 %v745
      %947 = vmatmul.mubr.bf16.gmra.mxu0 %v552
      %v948 = vpop.f32.mrf.mxu0
      %v949 = vadd.f32 0.0, %v948
      %v950 = vpop.f32.mrf.mxu0
      %v951 = vpop.f32.mrf.mxu0
      %v952 = vadd.f32 0.0, %v951
      %v953 = vpop.f32.mrf.mxu0
      %954 = vmatprep.mubr.bf16.mxu0 %v748
      %955 = vmatmul.mubr.bf16.gmra.mxu0 %v554
      %v956 = vpop.f32.mrf.mxu0
      %v957 = vadd.f32 0.0, %v956
      %v958 = vpop.f32.mrf.mxu0
      %v959 = vpop.f32.mrf.mxu0
      %v960 = vadd.f32 0.0, %v959
      %v961 = vpop.f32.mrf.mxu0
      %962 = vmatprep.mubr.bf16.mxu0 %v751
      %963 = vmatmul.mubr.bf16.gmra.mxu0 %v556
      %v964 = vpop.f32.mrf.mxu0
      %v965 = vadd.f32 0.0, %v964
      %v966 = vpop.f32.mrf.mxu0
      %v967 = vpop.f32.mrf.mxu0
      %v968 = vadd.f32 0.0, %v967
      %v969 = vpop.f32.mrf.mxu0
      %970 = vmatprep.mubr.bf16.mxu0 %v754
      %971 = vmatmul.mubr.bf16.gmra.mxu0 %v558
      %v972 = vpop.f32.mrf.mxu0
      %v973 = vadd.f32 0.0, %v972
      %v974 = vpop.f32.mrf.mxu0
      %v975 = vpop.f32.mrf.mxu0
      %v976 = vadd.f32 0.0, %v975
      %v977 = vpop.f32.mrf.mxu0
      %978 = vmatprep.mubr.bf16.mxu0 %v757
      %979 = vmatmul.mubr.bf16.gmra.mxu0 %v560
      %v980 = vpop.f32.mrf.mxu0
      %v981 = vadd.f32 0.0, %v980
      %v982 = vpop.f32.mrf.mxu0
      %v983 = vpop.f32.mrf.mxu0
      %v984 = vadd.f32 0.0, %v983
      %v985 = vpop.f32.mrf.mxu0
      %986 = vmatprep.mubr.bf16.mxu0 %v760
      %987 = vmatmul.mubr.bf16.gmra.mxu0 %v562
      %v988 = vpop.f32.mrf.mxu0
      %v989 = vadd.f32 0.0, %v988
      %v990 = vpop.f32.mrf.mxu0
      %v991 = vpop.f32.mrf.mxu0
      %v992 = vadd.f32 0.0, %v991
      %v993 = vpop.f32.mrf.mxu0
      %994 = vmatprep.mubr.bf16.mxu0 %v763
      %995 = vmatmul.mubr.bf16.gmra.mxu0 %v564
      %v996 = vpop.f32.mrf.mxu0
      %v997 = vadd.f32 0.0, %v996
      %v998 = vpop.f32.mrf.mxu0
      %v999 = vpop.f32.mrf.mxu0
      %v1000 = vadd.f32 0.0, %v999
      %v1001 = vpop.f32.mrf.mxu0
      %1002 = vmatprep.mubr.bf16.mxu0 %v766
      %1003 = vmatmul.mubr.bf16.gmra.mxu0 %v566
      %v1004 = vpop.f32.mrf.mxu0
      %v1005 = vadd.f32 0.0, %v1004
      %v1006 = vpop.f32.mrf.mxu0
      %v1007 = vpop.f32.mrf.mxu0
      %v1008 = vadd.f32 0.0, %v1007
      %v1009 = vpop.f32.mrf.mxu0
      %1010 = vmatprep.mubr.bf16.mxu0 %v769
      %1011 = vmatmul.mubr.bf16.gmra.mxu0 %v568
      %v1012 = vpop.f32.mrf.mxu0
      %v1013 = vadd.f32 0.0, %v1012
      %v1014 = vpop.f32.mrf.mxu0
      %v1015 = vpop.f32.mrf.mxu0
      %v1016 = vadd.f32 0.0, %v1015
      %v1017 = vpop.f32.mrf.mxu0
      %1018 = vmatprep.mubr.bf16.mxu0 %v772
      %1019 = vmatmul.mubr.bf16.gmra.mxu0 %v570
      %v1020 = vpop.f32.mrf.mxu0
      %v1021 = vadd.f32 0.0, %v1020
      %v1022 = vpop.f32.mrf.mxu0
      %v1023 = vpop.f32.mrf.mxu0
      %v1024 = vadd.f32 0.0, %v1023
      %v1025 = vpop.f32.mrf.mxu0
      %1026 = vmatprep.mubr.bf16.mxu0 %v775
      %1027 = vmatmul.mubr.bf16.gmra.mxu0 %v572
      %v1028 = vpop.f32.mrf.mxu0
      %v1029 = vadd.f32 0.0, %v1028
      %v1030 = vpop.f32.mrf.mxu0
      %v1031 = vpop.f32.mrf.mxu0
      %v1032 = vadd.f32 0.0, %v1031
      %v1033 = vpop.f32.mrf.mxu0
      %1034 = vmatprep.mubr.bf16.mxu0 %v778
      %1035 = vmatmul.mubr.bf16.gmra.mxu0 %v574
      %v1036 = vpop.f32.mrf.mxu0
      %v1037 = vadd.f32 0.0, %v1036
      %v1038 = vpop.f32.mrf.mxu0
      %v1039 = vpop.f32.mrf.mxu0
      %v1040 = vadd.f32 0.0, %v1039
      %v1041 = vpop.f32.mrf.mxu0
      %1042 = vmatprep.mubr.bf16.mxu0 %v781
      %1043 = vmatmul.mubr.bf16.gmra.mxu0 %v576
      %v1044 = vpop.f32.mrf.mxu0
      %v1045 = vadd.f32 0.0, %v1044
      %v1046 = vpop.f32.mrf.mxu0
      %v1047 = vpop.f32.mrf.mxu0
      %v1048 = vadd.f32 0.0, %v1047
      %v1049 = vpop.f32.mrf.mxu0
      %1050 = vmatprep.mubr.bf16.mxu0 %v784
      %1051 = vmatmul.mubr.bf16.gmra.mxu0 %v578
      %v1052 = vpop.f32.mrf.mxu0
      %v1053 = vadd.f32 0.0, %v1052
      %v1054 = vpop.f32.mrf.mxu0
      %v1055 = vpop.f32.mrf.mxu0
      %v1056 = vadd.f32 0.0, %v1055
      %v1057 = vpop.f32.mrf.mxu0
      %1058 = vmatprep.mubr.bf16.mxu0 %v787
      %1059 = vmatmul.mubr.bf16.gmra.mxu0 %v580
      %v1060 = vpop.f32.mrf.mxu0
      %v1061 = vadd.f32 0.0, %v1060
      %v1062 = vpop.f32.mrf.mxu0
      %v1063 = vpop.f32.mrf.mxu0
      %v1064 = vadd.f32 0.0, %v1063
      %v1065 = vpop.f32.mrf.mxu0
      %1066 = vmatprep.mubr.bf16.mxu0 %v790
      %1067 = vmatmul.mubr.bf16.gmra.mxu0 %v582
      %v1068 = vpop.f32.mrf.mxu0
      %v1069 = vadd.f32 0.0, %v1068
      %v1070 = vpop.f32.mrf.mxu0
      %v1071 = vpop.f32.mrf.mxu0
      %v1072 = vadd.f32 0.0, %v1071
      %v1073 = vpop.f32.mrf.mxu0
      %1074 = vmatprep.mubr.bf16.mxu0 %v793
      %1075 = vmatmul.mubr.bf16.gmra.mxu0 %v584
      %v1076 = vpop.f32.mrf.mxu0
      %v1077 = vadd.f32 0.0, %v1076
      %v1078 = vpop.f32.mrf.mxu0
      %v1079 = vpop.f32.mrf.mxu0
      %v1080 = vadd.f32 0.0, %v1079
      %v1081 = vpop.f32.mrf.mxu0
      %1082 = vmatprep.mubr.bf16.mxu0 %v796
      %1083 = vmatmul.mubr.bf16.gmra.mxu0 %v586
      %v1084 = vpop.f32.mrf.mxu0
      %v1085 = vadd.f32 0.0, %v1084
      %v1086 = vpop.f32.mrf.mxu0
      %v1087 = vpop.f32.mrf.mxu0
      %v1088 = vadd.f32 0.0, %v1087
      %v1089 = vpop.f32.mrf.mxu0
      %1090 = vdwg.mxu0
      %v1091 = vld [vmem:[%s2] sm:$0x1]
      %v1093 = vlaneseq
      %v1094 = vshrl.u32 %v1093, 7
      %v1095 = vsub.s32 0, %v1094
      %v1096 = vrot.slane %v1091, %v1095
      %v1098 = vmul.f32 %v837, %v1096
      %v1099 = vmul.f32 %v840, %v1096
      %v1100 = vmul.f32 %v845, %v1096
      %v1101 = vmul.f32 %v848, %v1096
      %v1102 = vmul.f32 %v853, %v1096
      %v1103 = vmul.f32 %v856, %v1096
      %v1104 = vmul.f32 %v861, %v1096
      %v1105 = vmul.f32 %v864, %v1096
      %v1106 = vmul.f32 %v869, %v1096
      %v1107 = vmul.f32 %v872, %v1096
      %v1108 = vmul.f32 %v877, %v1096
      %v1109 = vmul.f32 %v880, %v1096
      %v1110 = vmul.f32 %v885, %v1096
      %v1111 = vmul.f32 %v888, %v1096
      %v1112 = vmul.f32 %v893, %v1096
      %v1113 = vmul.f32 %v896, %v1096
      %v1114 = vmul.f32 %v901, %v1096
      %v1115 = vmul.f32 %v904, %v1096
      %v1116 = vmul.f32 %v909, %v1096
      %v1117 = vmul.f32 %v912, %v1096
      %v1118 = vmul.f32 %v917, %v1096
      %v1119 = vmul.f32 %v920, %v1096
      %v1120 = vmul.f32 %v925, %v1096
      %v1121 = vmul.f32 %v928, %v1096
      %v1122 = vmul.f32 %v933, %v1096
      %v1123 = vmul.f32 %v936, %v1096
      %v1124 = vmul.f32 %v941, %v1096
      %v1125 = vmul.f32 %v944, %v1096
      %v1126 = vmul.f32 %v949, %v1096
      %v1127 = vmul.f32 %v952, %v1096
      %v1128 = vmul.f32 %v957, %v1096
      %v1129 = vmul.f32 %v960, %v1096
      %v1130 = vmul.f32 %v965, %v1096
      %v1131 = vmul.f32 %v968, %v1096
      %v1132 = vmul.f32 %v973, %v1096
      %v1133 = vmul.f32 %v976, %v1096
      %v1134 = vmul.f32 %v981, %v1096
      %v1135 = vmul.f32 %v984, %v1096
      %v1136 = vmul.f32 %v989, %v1096
      %v1137 = vmul.f32 %v992, %v1096
      %v1138 = vmul.f32 %v997, %v1096
      %v1139 = vmul.f32 %v1000, %v1096
      %v1140 = vmul.f32 %v1005, %v1096
      %v1141 = vmul.f32 %v1008, %v1096
      %v1142 = vmul.f32 %v1013, %v1096
      %v1143 = vmul.f32 %v1016, %v1096
      %v1144 = vmul.f32 %v1021, %v1096
      %v1145 = vmul.f32 %v1024, %v1096
      %v1146 = vmul.f32 %v1029, %v1096
      %v1147 = vmul.f32 %v1032, %v1096
      %v1148 = vmul.f32 %v1037, %v1096
      %v1149 = vmul.f32 %v1040, %v1096
      %v1150 = vmul.f32 %v1045, %v1096
      %v1151 = vmul.f32 %v1048, %v1096
      %v1152 = vmul.f32 %v1053, %v1096
      %v1153 = vmul.f32 %v1056, %v1096
      %v1154 = vmul.f32 %v1061, %v1096
      %v1155 = vmul.f32 %v1064, %v1096
      %v1156 = vmul.f32 %v1069, %v1096
      %v1157 = vmul.f32 %v1072, %v1096
      %v1158 = vmul.f32 %v1077, %v1096
      %v1159 = vmul.f32 %v1080, %v1096
      %v1160 = vmul.f32 %v1085, %v1096
      %v1161 = vmul.f32 %v1088, %v1096
      %v1162 = vld [vmem:[%s3] sm:$0x1]
      %v1164 = vlaneseq
      %v1165 = vshrl.u32 %v1164, 7
      %v1166 = vsub.s32 0, %v1165
      %v1167 = vrot.slane %v1162, %v1166
      %v1169 = vadd.f32 %v1098, %v1167
      %v1170 = vadd.f32 %v1099, %v1167
      %v1171 = vadd.f32 %v1100, %v1167
      %v1172 = vadd.f32 %v1101, %v1167
      %v1173 = vadd.f32 %v1102, %v1167
      %v1174 = vadd.f32 %v1103, %v1167
      %v1175 = vadd.f32 %v1104, %v1167
      %v1176 = vadd.f32 %v1105, %v1167
      %v1177 = vadd.f32 %v1106, %v1167
      %v1178 = vadd.f32 %v1107, %v1167
      %v1179 = vadd.f32 %v1108, %v1167
      %v1180 = vadd.f32 %v1109, %v1167
      %v1181 = vadd.f32 %v1110, %v1167
      %v1182 = vadd.f32 %v1111, %v1167
      %v1183 = vadd.f32 %v1112, %v1167
      %v1184 = vadd.f32 %v1113, %v1167
      %v1185 = vadd.f32 %v1114, %v1167
      %v1186 = vadd.f32 %v1115, %v1167
      %v1187 = vadd.f32 %v1116, %v1167
      %v1188 = vadd.f32 %v1117, %v1167
      %v1189 = vadd.f32 %v1118, %v1167
      %v1190 = vadd.f32 %v1119, %v1167
      %v1191 = vadd.f32 %v1120, %v1167
      %v1192 = vadd.f32 %v1121, %v1167
      %v1193 = vadd.f32 %v1122, %v1167
      %v1194 = vadd.f32 %v1123, %v1167
      %v1195 = vadd.f32 %v1124, %v1167
      %v1196 = vadd.f32 %v1125, %v1167
      %v1197 = vadd.f32 %v1126, %v1167
      %v1198 = vadd.f32 %v1127, %v1167
      %v1199 = vadd.f32 %v1128, %v1167
      %v1200 = vadd.f32 %v1129, %v1167
      %v1201 = vadd.f32 %v1130, %v1167
      %v1202 = vadd.f32 %v1131, %v1167
      %v1203 = vadd.f32 %v1132, %v1167
      %v1204 = vadd.f32 %v1133, %v1167
      %v1205 = vadd.f32 %v1134, %v1167
      %v1206 = vadd.f32 %v1135, %v1167
      %v1207 = vadd.f32 %v1136, %v1167
      %v1208 = vadd.f32 %v1137, %v1167
      %v1209 = vadd.f32 %v1138, %v1167
      %v1210 = vadd.f32 %v1139, %v1167
      %v1211 = vadd.f32 %v1140, %v1167
      %v1212 = vadd.f32 %v1141, %v1167
      %v1213 = vadd.f32 %v1142, %v1167
      %v1214 = vadd.f32 %v1143, %v1167
      %v1215 = vadd.f32 %v1144, %v1167
      %v1216 = vadd.f32 %v1145, %v1167
      %v1217 = vadd.f32 %v1146, %v1167
      %v1218 = vadd.f32 %v1147, %v1167
      %v1219 = vadd.f32 %v1148, %v1167
      %v1220 = vadd.f32 %v1149, %v1167
      %v1221 = vadd.f32 %v1150, %v1167
      %v1222 = vadd.f32 %v1151, %v1167
      %v1223 = vadd.f32 %v1152, %v1167
      %v1224 = vadd.f32 %v1153, %v1167
      %v1225 = vadd.f32 %v1154, %v1167
      %v1226 = vadd.f32 %v1155, %v1167
      %v1227 = vadd.f32 %v1156, %v1167
      %v1228 = vadd.f32 %v1157, %v1167
      %v1229 = vadd.f32 %v1158, %v1167
      %v1230 = vadd.f32 %v1159, %v1167
      %v1231 = vadd.f32 %v1160, %v1167
      %v1232 = vadd.f32 %v1161, %v1167
      %v1233 = vmax.f32 %v1169, 0.0
      %v1234 = vmax.f32 %v1170, 0.0
      %v1235 = vmax.f32 %v1171, 0.0
      %v1236 = vmax.f32 %v1172, 0.0
      %v1237 = vmax.f32 %v1173, 0.0
      %v1238 = vmax.f32 %v1174, 0.0
      %v1239 = vmax.f32 %v1175, 0.0
      %v1240 = vmax.f32 %v1176, 0.0
      %v1241 = vmax.f32 %v1177, 0.0
      %v1242 = vmax.f32 %v1178, 0.0
      %v1243 = vmax.f32 %v1179, 0.0
      %v1244 = vmax.f32 %v1180, 0.0
      %v1245 = vmax.f32 %v1181, 0.0
      %v1246 = vmax.f32 %v1182, 0.0
      %v1247 = vmax.f32 %v1183, 0.0
      %v1248 = vmax.f32 %v1184, 0.0
      %v1249 = vmax.f32 %v1185, 0.0
      %v1250 = vmax.f32 %v1186, 0.0
      %v1251 = vmax.f32 %v1187, 0.0
      %v1252 = vmax.f32 %v1188, 0.0
      %v1253 = vmax.f32 %v1189, 0.0
      %v1254 = vmax.f32 %v1190, 0.0
      %v1255 = vmax.f32 %v1191, 0.0
      %v1256 = vmax.f32 %v1192, 0.0
      %v1257 = vmax.f32 %v1193, 0.0
      %v1258 = vmax.f32 %v1194, 0.0
      %v1259 = vmax.f32 %v1195, 0.0
      %v1260 = vmax.f32 %v1196, 0.0
      %v1261 = vmax.f32 %v1197, 0.0
      %v1262 = vmax.f32 %v1198, 0.0
      %v1263 = vmax.f32 %v1199, 0.0
      %v1264 = vmax.f32 %v1200, 0.0
      %v1265 = vmax.f32 %v1201, 0.0
      %v1266 = vmax.f32 %v1202, 0.0
      %v1267 = vmax.f32 %v1203, 0.0
      %v1268 = vmax.f32 %v1204, 0.0
      %v1269 = vmax.f32 %v1205, 0.0
      %v1270 = vmax.f32 %v1206, 0.0
      %v1271 = vmax.f32 %v1207, 0.0
      %v1272 = vmax.f32 %v1208, 0.0
      %v1273 = vmax.f32 %v1209, 0.0
      %v1274 = vmax.f32 %v1210, 0.0
      %v1275 = vmax.f32 %v1211, 0.0
      %v1276 = vmax.f32 %v1212, 0.0
      %v1277 = vmax.f32 %v1213, 0.0
      %v1278 = vmax.f32 %v1214, 0.0
      %v1279 = vmax.f32 %v1215, 0.0
      %v1280 = vmax.f32 %v1216, 0.0
      %v1281 = vmax.f32 %v1217, 0.0
      %v1282 = vmax.f32 %v1218, 0.0
      %v1283 = vmax.f32 %v1219, 0.0
      %v1284 = vmax.f32 %v1220, 0.0
      %v1285 = vmax.f32 %v1221, 0.0
      %v1286 = vmax.f32 %v1222, 0.0
      %v1287 = vmax.f32 %v1223, 0.0
      %v1288 = vmax.f32 %v1224, 0.0
      %v1289 = vmax.f32 %v1225, 0.0
      %v1290 = vmax.f32 %v1226, 0.0
      %v1291 = vmax.f32 %v1227, 0.0
      %v1292 = vmax.f32 %v1228, 0.0
      %v1293 = vmax.f32 %v1229, 0.0
      %v1294 = vmax.f32 %v1230, 0.0
      %v1295 = vmax.f32 %v1231, 0.0
      %v1296 = vmax.f32 %v1232, 0.0
      %vm1297 = vcmask 64512
      %1298 = vst.msk [vmem:[%s238] sm:$0xff] %vm1297, %v1233
      %1299 = vst.msk [vmem:[%s238 + $0x8] sm:$0xff] %vm1297, %v1234
      %1300 = vst.msk [vmem:[%s238 + $0x10] sm:$0xff] %vm1297, %v1235
      %1301 = vst.msk [vmem:[%s238 + $0x18] sm:$0xff] %vm1297, %v1236
      %1302 = vst.msk [vmem:[%s238 + $0x20] sm:$0xff] %vm1297, %v1237
      %1303 = vst.msk [vmem:[%s238 + $0x28] sm:$0xff] %vm1297, %v1238
      %1304 = vst.msk [vmem:[%s238 + $0x30] sm:$0xff] %vm1297, %v1239
      %1305 = vst.msk [vmem:[%s238 + $0x38] sm:$0xff] %vm1297, %v1240
      %1306 = vst.msk [vmem:[%s238 + $0x40] sm:$0xff] %vm1297, %v1241
      %1307 = vst.msk [vmem:[%s238 + $0x48] sm:$0xff] %vm1297, %v1242
      %1308 = vst.msk [vmem:[%s238 + $0x50] sm:$0xff] %vm1297, %v1243
      %1309 = vst.msk [vmem:[%s238 + $0x58] sm:$0xff] %vm1297, %v1244
      %1310 = vst.msk [vmem:[%s238 + $0x60] sm:$0xff] %vm1297, %v1245
      %1311 = vst.msk [vmem:[%s238 + $0x68] sm:$0xff] %vm1297, %v1246
      %1312 = vst.msk [vmem:[%s238 + $0x70] sm:$0xff] %vm1297, %v1247
      %1313 = vst.msk [vmem:[%s238 + $0x78] sm:$0xff] %vm1297, %v1248
      %1314 = vst.msk [vmem:[%s238 + $0x80] sm:$0xff] %vm1297, %v1249
      %1315 = vst.msk [vmem:[%s238 + $0x88] sm:$0xff] %vm1297, %v1250
      %1316 = vst.msk [vmem:[%s238 + $0x90] sm:$0xff] %vm1297, %v1251
      %1317 = vst.msk [vmem:[%s238 + $0x98] sm:$0xff] %vm1297, %v1252
      %1318 = vst.msk [vmem:[%s238 + $0xa0] sm:$0xff] %vm1297, %v1253
      %1319 = vst.msk [vmem:[%s238 + $0xa8] sm:$0xff] %vm1297, %v1254
      %1320 = vst.msk [vmem:[%s238 + $0xb0] sm:$0xff] %vm1297, %v1255
      %1321 = vst.msk [vmem:[%s238 + $0xb8] sm:$0xff] %vm1297, %v1256
      %1322 = vst.msk [vmem:[%s238 + $0xc0] sm:$0xff] %vm1297, %v1257
      %1323 = vst.msk [vmem:[%s238 + $0xc8] sm:$0xff] %vm1297, %v1258
      %1324 = vst.msk [vmem:[%s238 + $0xd0] sm:$0xff] %vm1297, %v1259
      %1325 = vst.msk [vmem:[%s238 + $0xd8] sm:$0xff] %vm1297, %v1260
      %1326 = vst.msk [vmem:[%s238 + $0xe0] sm:$0xff] %vm1297, %v1261
      %1327 = vst.msk [vmem:[%s238 + $0xe8] sm:$0xff] %vm1297, %v1262
      %1328 = vst.msk [vmem:[%s238 + $0xf0] sm:$0xff] %vm1297, %v1263
      %1329 = vst.msk [vmem:[%s238 + $0xf8] sm:$0xff] %vm1297, %v1264
      %1330 = vst.msk [vmem:[%s238 + $0x100] sm:$0xff] %vm1297, %v1265
      %1331 = vst.msk [vmem:[%s238 + $0x108] sm:$0xff] %vm1297, %v1266
      %1332 = vst.msk [vmem:[%s238 + $0x110] sm:$0xff] %vm1297, %v1267
      %1333 = vst.msk [vmem:[%s238 + $0x118] sm:$0xff] %vm1297, %v1268
      %1334 = vst.msk [vmem:[%s238 + $0x120] sm:$0xff] %vm1297, %v1269
      %1335 = vst.msk [vmem:[%s238 + $0x128] sm:$0xff] %vm1297, %v1270
      %1336 = vst.msk [vmem:[%s238 + $0x130] sm:$0xff] %vm1297, %v1271
      %1337 = vst.msk [vmem:[%s238 + $0x138] sm:$0xff] %vm1297, %v1272
      %1338 = vst.msk [vmem:[%s238 + $0x140] sm:$0xff] %vm1297, %v1273
      %1339 = vst.msk [vmem:[%s238 + $0x148] sm:$0xff] %vm1297, %v1274
      %1340 = vst.msk [vmem:[%s238 + $0x150] sm:$0xff] %vm1297, %v1275
      %1341 = vst.msk [vmem:[%s238 + $0x158] sm:$0xff] %vm1297, %v1276
      %1342 = vst.msk [vmem:[%s238 + $0x160] sm:$0xff] %vm1297, %v1277
      %1343 = vst.msk [vmem:[%s238 + $0x168] sm:$0xff] %vm1297, %v1278
      %1344 = vst.msk [vmem:[%s238 + $0x170] sm:$0xff] %vm1297, %v1279
      %1345 = vst.msk [vmem:[%s238 + $0x178] sm:$0xff] %vm1297, %v1280
      %1346 = vst.msk [vmem:[%s238 + $0x180] sm:$0xff] %vm1297, %v1281
      %1347 = vst.msk [vmem:[%s238 + $0x188] sm:$0xff] %vm1297, %v1282
      %1348 = vst.msk [vmem:[%s238 + $0x190] sm:$0xff] %vm1297, %v1283
      %1349 = vst.msk [vmem:[%s238 + $0x198] sm:$0xff] %vm1297, %v1284
      %1350 = vst.msk [vmem:[%s238 + $0x1a0] sm:$0xff] %vm1297, %v1285
      %1351 = vst.msk [vmem:[%s238 + $0x1a8] sm:$0xff] %vm1297, %v1286
      %1352 = vst.msk [vmem:[%s238 + $0x1b0] sm:$0xff] %vm1297, %v1287
      %1353 = vst.msk [vmem:[%s238 + $0x1b8] sm:$0xff] %vm1297, %v1288
      %1354 = vst.msk [vmem:[%s238 + $0x1c0] sm:$0xff] %vm1297, %v1289
      %1355 = vst.msk [vmem:[%s238 + $0x1c8] sm:$0xff] %vm1297, %v1290
      %1356 = vst.msk [vmem:[%s238 + $0x1d0] sm:$0xff] %vm1297, %v1291
      %1357 = vst.msk [vmem:[%s238 + $0x1d8] sm:$0xff] %vm1297, %v1292
      %1358 = vst.msk [vmem:[%s238 + $0x1e0] sm:$0xff] %vm1297, %v1293
      %1359 = vst.msk [vmem:[%s238 + $0x1e8] sm:$0xff] %vm1297, %v1294
      %1360 = vst.msk [vmem:[%s238 + $0x1f0] sm:$0xff] %vm1297, %v1295
      %1361 = vst.msk [vmem:[%s238 + $0x1f8] sm:$0xff] %vm1297, %v1296
      %s1362 = smul.u32 64, %s20
      %p1363 = scmp.lt.s32.totalorder %s19, 1
      %s1364 = scalar_select %p1363, %s19, 1
      %p1365 = scmp.lt.s32.totalorder %s1362, 63
      %s1366 = scalar_select %p1365, %s1362, 63
      %s1367 = smul.addr %s1364, 64
      %s1368 = sadd.s32 %s1366, %s1367
      %s1369 = smul.addr %s1368, 8
      %s1370 = scalar_lea.vmem %s4, %s1369
      // Predicated region
      $region37: #{double_conv.3} parent=35 // pred_check
        %p1371 = pneg %p138
      $region38: #{double_conv.3} parent=35 // pred_check_branch
        %1373 = sbr.rel (%p1371) target = $region40
      $region39: #{double_conv.3} parent=35 // pred_region
        %s1374 = smul.u32 64, %s20
      $region40: #{double_conv.3} parent=35 // pred_fallthru
        _
    $region36: #{double_conv.3} parent=5 // pred_fallthru
      _
    %p1375 = scmp.le.s32.totalorder 2, %s10
    // Predicated region
    $region41: #{double_conv.3} parent=5 // pred_check
      %p1376 = pneg %p1375
    $region42: #{double_conv.3} parent=5 // pred_check_branch
      %1378 = sbr.rel (%p1376) target = $region44
    $region43: #{double_conv.3} parent=5 // pred_region
      %s1379 = ssub.s32 %s10, 2
      // Predicated region
      $region45: #{double_conv.3} parent=43 // pred_check
        %p1380 = pneg %p144
      $region46: #{double_conv.3} parent=43 // pred_check_branch
        %1382 = sbr.rel (%p1380) target = $region48
      $region47: #{double_conv.3} parent=43 // pred_region
        %s1383 = smul.u32 64, %s22
        %p1384 = scmp.lt.s32.totalorder %s21, 1
        %s1385 = scalar_select %p1384, %s21, 1
        %p1386 = scmp.lt.s32.totalorder %s1383, 63
        %s1387 = scalar_select %p1386, %s1383, 63
        %s1388 = smul.addr %s1385, 64
        %s1389 = sadd.s32 %s1387, %s1388
        %s1390 = smul.addr %s1389, 8
        %s1391 = scalar_lea.vmem %s4, %s1390
      $region48: #{double_conv.3} parent=43 // pred_fallthru
        _
    $region44: #{double_conv.3} parent=5 // pred_fallthru
      _
  $region6: #{double_conv.3} parent=0 // loop_footer
    %s14 = sadd.s32 1, %s10
  $region7: #{double_conv.3} parent=0 // loop_footer_branch
    %9 = sbr.rel target = $region3
  $region8: #{double_conv.3} parent=0 // loop_exit
    _

</llo_original>
